<compile_context>
chip_gen: v7x
topology: tpu7x:2x2x1
jax: 0.10.0
libtpu: 0.0.40
codegen_flags: <defaults>
</compile_context>

<pallas_src>
import functools

import jax
import jax.numpy as jnp
from jax.experimental import pallas as pl
from jax.experimental.pallas import tpu as pltpu


def _vmem_limit_bytes():
    """~3/4 of physical VMEM (≈96 MiB on v5e/v6e, ≈48 MiB on v7x)."""
    cap = None
    try:
        info = pltpu.get_tpu_info()
        cap = getattr(info, "vmem_capacity_bytes", None)
    except Exception:
        cap = None
    if not cap:
        cap = 128 * 1024 * 1024
    return int(min(100 * 1024 * 1024, (cap * 3) // 4))


# ----------------------------------------------------------------------------
# Fused resident kernel: projection + K hops + bias, everything in VMEM.
# ----------------------------------------------------------------------------
def _fused_kernel(x_ref, adj_ref, wt_ref, b_ref, o_ref, *, coefs, c0, compute_dtype):
    # Projection (single MXU pass, f32 accumulation): z0 = x @ W^T
    z = jnp.dot(x_ref[...], wt_ref[...], preferred_element_type=jnp.float32)
    h = c0 * z
    adj = adj_ref[...]                       # VMEM-resident; fetched from HBM once
    for c_s in coefs:                        # K is small & static -> unrolled
        z = jnp.dot(adj, z.astype(compute_dtype), preferred_element_type=jnp.float32)
        h = h + c_s * z
    o_ref[...] = (h + b_ref[...]).astype(o_ref.dtype)


# ----------------------------------------------------------------------------
# Tiled fallback, kernel A: z0 = x @ W^T  (row-tiled, megacore-parallel)
# ----------------------------------------------------------------------------
def _proj_kernel(x_ref, wt_ref, z_ref):
    z_ref[...] = jnp.dot(
        x_ref[...], wt_ref[...], preferred_element_type=jnp.float32
    ).astype(z_ref.dtype)


# ----------------------------------------------------------------------------
# Tiled fallback, kernel B: K-hop propagation with streamed adj row blocks,
# parity-double-buffered z state, resident output accumulator.
# ----------------------------------------------------------------------------
def _prop_kernel(c_ref, adj_ref, z0_ref, b_ref, o_ref, z_state, *,
                 num_steps, tm, c0, compute_dtype):
    sp = pl.program_id(0)                     # hop index - 1      (sequential)
    i = pl.program_id(1)                      # node-row tile      (sequential)
    row0 = pl.multiple_of(i * tm, tm)
    rows = pl.ds(row0, tm)
    adj_rows = adj_ref[...]                   # (tm, N), already compute dtype
    c_s = c_ref[sp]                           # geometric coefficient (SMEM scalar)

    @pl.when(sp == 0)
    def _():
        # Hop 1 feeds directly from the resident z0 (no seed copy); c0*z0
        # initializes the resident output accumulator for this row tile.
        z_new = jnp.dot(adj_rows, z0_ref[...].astype(compute_dtype),
                        preferred_element_type=jnp.float32)
        z_state[1, rows, :] = z_new
        o_ref[rows, :] = c0 * z0_ref[rows, :] + c_s * z_new

    @pl.when(sp > 0)
    def _():
        # Parity double-buffer: read z_s from buffer sp&1, write z_{s+1} rows
        # into buffer (sp+1)&1 -> no full-state copy at step boundaries.
        z_prev = z_state[sp & 1]
        z_new = jnp.dot(adj_rows, z_prev.astype(compute_dtype),
                        preferred_element_type=jnp.float32)
        z_state[(sp + 1) & 1, rows, :] = z_new
        o_ref[rows, :] = o_ref[rows, :] + c_s * z_new

    @pl.when(sp == num_steps - 1)
    def _():
        o_ref[rows, :] = o_ref[rows, :] + b_ref[...]


# ----------------------------------------------------------------------------
# Wrapper
# ----------------------------------------------------------------------------
def _pick_row_tile(n, adj_bytes, c_pad, vmem_budget):
    resident = 6 * n * c_pad * 4            # z0 + resident out + (2,N,C_pad) state
    divisors = [t for t in (1024, 512, 256, 128, 64, 32, 16, 8) if n % t == 0]
    for t in divisors:
        if 2 * t * n * adj_bytes + resident <= vmem_budget:
            return t
    return divisors[-1] if divisors else n


def ssgc_forward(adj, x, weight, bias, *, K, alpha, use_bf16=True,
                 tile_rows=None, force_tiled=False):
    """adj: (N,N) dense normalized-augmented adjacency, x: (N,F),
    weight: (C,F) [torch nn.Linear layout], bias: (C,)."""
    N, F = x.shape
    C = weight.shape[0]
    assert adj.shape == (N, N)
    alpha = float(alpha)
    K = int(K)

    C_pad = ((C + 127) // 128) * 128          # lane-dense output width
    compute_dtype = jnp.bfloat16 if use_bf16 else jnp.float32
    op_bytes = 2 if use_bf16 else 4
    vmem_limit = _vmem_limit_bytes()

    # Hoisted recurrence coefficients (the in-loop /K becomes a geometric weight).
    inv_k = 1.0 / K
    coefs = tuple(float((1.0 - alpha) * inv_k ** (K - s)) for s in range(K))
    c0 = float(alpha * sum(inv_k ** j for j in range(1, K + 1)))

    # Lane-dense classifier; compute-dtype MXU operands (zeros pad -> zeros out).
    wt_pad = jnp.zeros((F, C_pad), jnp.float32).at[:, :C].set(
        weight.T.astype(jnp.float32)).astype(compute_dtype)
    b_pad = jnp.zeros((1, C_pad), jnp.float32).at[:, :C].set(
        bias.reshape(1, C).astype(jnp.float32))
    x_c = x.astype(compute_dtype)
    adj_c = adj.astype(compute_dtype)

    # ---- Fused resident path: adj fetched from HBM exactly once --------------
    fused_vmem = (N * N * op_bytes + N * F * op_bytes + F * C_pad * op_bytes
                  + 6 * N * C_pad * 4 + C_pad * 4)
    if not force_tiled and fused_vmem <= int(0.7 * vmem_limit):
        kern = functools.partial(_fused_kernel, coefs=coefs, c0=c0,
                                 compute_dtype=compute_dtype)
        out_pad = pl.pallas_call(
            kern,
            out_shape=jax.ShapeDtypeStruct((N, C_pad), jnp.float32),
            in_specs=[pl.BlockSpec(memory_space=pltpu.MemorySpace.VMEM)] * 4,
            out_specs=pl.BlockSpec(memory_space=pltpu.MemorySpace.VMEM),
            compiler_params=pltpu.CompilerParams(vmem_limit_bytes=vmem_limit),
            cost_estimate=pl.CostEstimate(
                flops=int(2 * N * F * C_pad + 2 * K * N * N * C_pad),
                transcendentals=0,
                bytes_accessed=int(N * N * op_bytes + N * F * op_bytes
                                   + F * C_pad * op_bytes + N * C_pad * 4)),
        )(x_c, adj_c, wt_pad, b_pad)
        return out_pad[:, :C]

    # ---- Tiled streaming path (adj does not fit VMEM) -------------------------
    tm = tile_rows if tile_rows is not None else _pick_row_tile(
        N, op_bytes, C_pad, int(0.8 * vmem_limit))
    assert N % tm == 0 and tm % 8 == 0, (N, tm)
    T = N // tm

    z0 = pl.pallas_call(
        _proj_kernel,
        out_shape=jax.ShapeDtypeStruct((N, C_pad), jnp.float32),
        grid=(T,),
        in_specs=[
            pl.BlockSpec((tm, F), lambda i: (i, 0)),
            pl.BlockSpec((F, C_pad), lambda i: (0, 0)),
        ],
        out_specs=pl.BlockSpec((tm, C_pad), lambda i: (i, 0)),
        compiler_params=pltpu.CompilerParams(
            dimension_semantics=("parallel",),
            vmem_limit_bytes=vmem_limit),
        cost_estimate=pl.CostEstimate(
            flops=int(2 * N * F * C_pad), transcendentals=0,
            bytes_accessed=int(N * F * op_bytes + F * C_pad * op_bytes
                               + N * C_pad * 4)),
    )(x_c, wt_pad)

    c_step = jnp.asarray(coefs, dtype=jnp.float32)
    kern_b = functools.partial(_prop_kernel, num_steps=K, tm=tm, c0=c0,
                               compute_dtype=compute_dtype)
    out_pad = pl.pallas_call(
        kern_b,
        out_shape=jax.ShapeDtypeStruct((N, C_pad), jnp.float32),
        grid=(K, T),
        in_specs=[
            pl.BlockSpec(memory_space=pltpu.MemorySpace.SMEM),    # c_step (K,)
            pl.BlockSpec((tm, N), lambda sp, i: (i, 0)),          # adj row block (streamed)
            pl.BlockSpec((N, C_pad), lambda sp, i: (0, 0)),       # z0 (resident)
            pl.BlockSpec((1, C_pad), lambda sp, i: (0, 0)),       # bias (resident)
        ],
        out_specs=pl.BlockSpec((N, C_pad), lambda sp, i: (0, 0)),  # resident accumulator
        scratch_shapes=[
            pltpu.VMEM((2, N, C_pad), jnp.float32),               # z parity double-buffer
        ],
        compiler_params=pltpu.CompilerParams(
            # Every row tile of hop s reads the FULL z of hop s-1 through the
            # scratch, so neither grid axis may be megacore-"parallel".
            dimension_semantics=("arbitrary", "arbitrary"),
            vmem_limit_bytes=vmem_limit),
        cost_estimate=pl.CostEstimate(
            flops=int(2 * K * N * N * C_pad), transcendentals=0,
            bytes_accessed=int(K * N * N * op_bytes + (K + 2) * N * C_pad * 4)),
    )(c_step, adj_c, z0, b_pad)

    return out_pad[:, :C]


# ----------------------------------------------------------------------------
# Plain-JAX glue + reference
# ----------------------------------------------------------------------------
def _norm_aug_adj(A):
    """getNormAugAdj: D^{-1/2} (A + I) D^{-1/2}, dense."""
    n = A.shape[0]
    A_hat = A + jnp.eye(n, dtype=A.dtype)
    deg = jnp.sum(A_hat, axis=1)
    d_inv_sqrt = 1.0 / jnp.sqrt(deg)
    return A_hat * d_inv_sqrt[:, None] * d_inv_sqrt[None, :]


def _reference(adj, x, weight, bias, K, alpha):
    feat = x
    h = jnp.zeros_like(x)
    for _ in range(K):
        feat = adj @ feat
        h = (h + (1.0 - alpha) * feat + alpha * x) / K
    return h @ weight.T + bias


if __name__ == "__main__":
    key = jax.random.PRNGKey(0)
    k_graph, k_feat, k_w, k_b = jax.random.split(key, 4)

    N = 256          # nodes
    in_feats = 128
    n_classes = 8
    K = 4
    alpha = 0.1

    # Deterministic random symmetric graph (self-loops added by norm-augmentation).
    logits = jax.random.uniform(k_graph, (N, N))
    A = (logits < 0.05).astype(jnp.float32)
    A = jnp.maximum(A, A.T)
    A = A * (1.0 - jnp.eye(N, dtype=jnp.float32))
    adj = _norm_aug_adj(A)

    x = jax.random.normal(k_feat, (N, in_feats), dtype=jnp.float32)

    # fc params: xavier_uniform_-style weight; small non-zero bias to exercise the add.
    bound = (6.0 / (in_feats + n_classes)) ** 0.5
    weight = jax.random.uniform(
        k_w, (n_classes, in_feats), minval=-bound, maxval=bound, dtype=jnp.float32)
    bias = 0.1 * jax.random.normal(k_b, (n_classes,), dtype=jnp.float32)

    ref = _reference(adj, x, weight, bias, K, alpha)

    # Fused resident path, f32: exact up to reassociation -> tight tolerance.
    out_f32 = jax.block_until_ready(
        ssgc_forward(adj, x, weight, bias, K=K, alpha=alpha, use_bf16=False))
    assert out_f32.shape == (N, n_classes)
    assert jnp.allclose(out_f32, ref, atol=1e-4, rtol=1e-4), "fused f32 mismatch"

    # Fused resident path, bf16 MXU operands (default): loosened tolerance.
    out_bf16 = jax.block_until_ready(
        ssgc_forward(adj, x, weight, bias, K=K, alpha=alpha, use_bf16=True))
    assert out_bf16.shape == (N, n_classes)
    assert jnp.allclose(out_bf16, ref, atol=5e-2, rtol=5e-2), "fused bf16 mismatch"

    # Tiled streaming fallback (forced), f32, T=2 row tiles: exercises the
    # resident-output accumulator + parity-double-buffered z state.
    out_tiled_f32 = jax.block_until_ready(
        ssgc_forward(adj, x, weight, bias, K=K, alpha=alpha, use_bf16=False,
                     force_tiled=True, tile_rows=128))
    assert out_tiled_f32.shape == (N, n_classes)
    assert jnp.allclose(out_tiled_f32, ref, atol=1e-4, rtol=1e-4), "tiled f32 mismatch"

    # Tiled streaming fallback (forced), bf16 adj streaming.
    out_tiled_bf16 = jax.block_until_ready(
        ssgc_forward(adj, x, weight, bias, K=K, alpha=alpha, use_bf16=True,
                     force_tiled=True, tile_rows=128))
    assert out_tiled_bf16.shape == (N, n_classes)
    assert jnp.allclose(out_tiled_bf16, ref, atol=5e-2, rtol=5e-2), "tiled bf16 mismatch"

    print("KERNEL_OK")
</pallas_src>

<mosaic_0001>
module attributes {stable_mosaic.version = 11 : i64} {
  func.func @_fused_kernel(%arg0: memref<256x128xf32, #tpu.memory_space<vmem>>, %arg1: memref<256x256xf32, #tpu.memory_space<vmem>>, %arg2: memref<128x128xf32, #tpu.memory_space<vmem>>, %arg3: memref<1x128xf32, #tpu.memory_space<vmem>>, %arg4: memref<256x128xf32, #tpu.memory_space<vmem>>) attributes {dimension_semantics = [], scalar_prefetch = 0 : i64, scratch_operands = 0 : i64, tpu.core_type = #tpu.core_type<tc>} {
    %c0 = arith.constant 0 : index
    %c0_0 = arith.constant 0 : index
    %0 = vector.load %arg0[%c0, %c0_0] : memref<256x128xf32, #tpu.memory_space<vmem>>, vector<256x128xf32>
    %c0_1 = arith.constant 0 : index
    %c0_2 = arith.constant 0 : index
    %1 = vector.load %arg2[%c0_1, %c0_2] : memref<128x128xf32, #tpu.memory_space<vmem>>, vector<128x128xf32>
    %cst = arith.constant dense<0.000000e+00> : vector<256x128xf32>
    %2 = tpu.matmul %0, %1, %cst {dimension_numbers = #tpu.dot_dimension_numbers<[1], [0], [0], [1], [0, 0, 1, 1], [], []>} : vector<256x128xf32>, vector<128x128xf32>, vector<256x128xf32> -> vector<256x128xf32>
    %cst_3 = arith.constant 0.033203125 : f32
    %3 = vector.broadcast %cst_3 : f32 to vector<256x128xf32>
    %4 = arith.mulf %3, %2 : vector<256x128xf32>
    %c0_4 = arith.constant 0 : index
    %c0_5 = arith.constant 0 : index
    %5 = vector.load %arg1[%c0_4, %c0_5] : memref<256x256xf32, #tpu.memory_space<vmem>>, vector<256x256xf32>
    %cst_6 = arith.constant dense<0.000000e+00> : vector<256x128xf32>
    %6 = tpu.matmul %5, %2, %cst_6 {dimension_numbers = #tpu.dot_dimension_numbers<[1], [0], [0], [1], [0, 0, 1, 1], [], []>} : vector<256x256xf32>, vector<256x128xf32>, vector<256x128xf32> -> vector<256x128xf32>
    %cst_7 = arith.constant 0.00351562491 : f32
    %7 = vector.broadcast %cst_7 : f32 to vector<256x128xf32>
    %8 = arith.mulf %7, %6 : vector<256x128xf32>
    %9 = arith.addf %4, %8 : vector<256x128xf32>
    %cst_8 = arith.constant dense<0.000000e+00> : vector<256x128xf32>
    %10 = tpu.matmul %5, %6, %cst_8 {dimension_numbers = #tpu.dot_dimension_numbers<[1], [0], [0], [1], [0, 0, 1, 1], [], []>} : vector<256x256xf32>, vector<256x128xf32>, vector<256x128xf32> -> vector<256x128xf32>
    %cst_9 = arith.constant 1.406250e-02 : f32
    %11 = vector.broadcast %cst_9 : f32 to vector<256x128xf32>
    %12 = arith.mulf %11, %10 : vector<256x128xf32>
    %13 = arith.addf %9, %12 : vector<256x128xf32>
    %cst_10 = arith.constant dense<0.000000e+00> : vector<256x128xf32>
    %14 = tpu.matmul %5, %10, %cst_10 {dimension_numbers = #tpu.dot_dimension_numbers<[1], [0], [0], [1], [0, 0, 1, 1], [], []>} : vector<256x256xf32>, vector<256x128xf32>, vector<256x128xf32> -> vector<256x128xf32>
    %cst_11 = arith.constant 5.625000e-02 : f32
    %15 = vector.broadcast %cst_11 : f32 to vector<256x128xf32>
    %16 = arith.mulf %15, %14 : vector<256x128xf32>
    %17 = arith.addf %13, %16 : vector<256x128xf32>
    %cst_12 = arith.constant dense<0.000000e+00> : vector<256x128xf32>
    %18 = tpu.matmul %5, %14, %cst_12 {dimension_numbers = #tpu.dot_dimension_numbers<[1], [0], [0], [1], [0, 0, 1, 1], [], []>} : vector<256x256xf32>, vector<256x128xf32>, vector<256x128xf32> -> vector<256x128xf32>
    %cst_13 = arith.constant 2.250000e-01 : f32
    %19 = vector.broadcast %cst_13 : f32 to vector<256x128xf32>
    %20 = arith.mulf %19, %18 : vector<256x128xf32>
    %21 = arith.addf %17, %20 : vector<256x128xf32>
    %c0_14 = arith.constant 0 : index
    %c0_15 = arith.constant 0 : index
    %22 = vector.load %arg3[%c0_14, %c0_15] : memref<1x128xf32, #tpu.memory_space<vmem>>, vector<1x128xf32>
    %23 = vector.broadcast %22 : vector<1x128xf32> to vector<256x128xf32>
    %24 = arith.addf %21, %23 : vector<256x128xf32>
    %c0_16 = arith.constant 0 : index
    %c0_17 = arith.constant 0 : index
    %25 = vector.load %arg4[%c0_16, %c0_17] : memref<256x128xf32, #tpu.memory_space<vmem>>, vector<256x128xf32>
    tpu.vector_store %arg4[%c0_16, %c0_17], %24 {strides = array<i32>} : memref<256x128xf32, #tpu.memory_space<vmem>>, vector<256x128xf32>,
    return
  }
}

</mosaic_0001>

<llo_original>
// kernel: tpu_custom_call.1
$region0: #{tpu_custom_call.1}
  #allocation0 [shape = 'u32[]', space=smem, size = 0x4, offset = 0x4, fixed_abs, tag = 'smem constant byte address 0x4 - core index']
  #allocation1 [shape = 'u32[144,128]{1,0:T(1,128)}', space=vmem, size = 0x12000, scoped, tag = 'internal scratch']
  %s0 = inlined_call_operand.hbm [shape: f32[256,128], index: 0, kind: input, shape index: {}]
  %s1 = inlined_call_operand.hbm [shape: f32[256,256], index: 1, kind: input, shape index: {}]
  %s2 = inlined_call_operand.hbm [shape: f32[128,128], index: 2, kind: input, shape index: {}]
  %s3 = inlined_call_operand.hbm [shape: f32[1,128], index: 3, kind: input, shape index: {}]
  %s4 = inlined_call_operand.hbm [shape: f32[256,128], index: 4, kind: output, shape index: {}]
  %s5 = sld [smem:[#allocation0]]
  $region42: #{tpu_custom_call.1} parent=0
    _
  %s7 = ssub.s32 1, %s5
  %s8 = scalar_select 0, %s7, %s5
  $region1: #{tpu_custom_call.1} parent=0
    #allocation2 [shape = 'u8[131072]{0}', space=vmem, size = 0x20000, scoped, tag = 'input window, operand 0, single buffered']
    #allocation3 [shape = 's32[1]{0}', space=sflag, size = 0x4, scoped, tag = 'scoped memory for tpu_custom_call.1']
    #allocation4 [shape = 's32[1]{0}', space=sflag, size = 0x4, scoped, tag = 'scoped memory for tpu_custom_call.1']
    #allocation5 [shape = 'u8[262144]{0}', space=vmem, size = 0x40000, scoped, tag = 'input window, operand 1, single buffered']
    #allocation6 [shape = 's32[1]{0}', space=sflag, size = 0x4, scoped, tag = 'scoped memory for tpu_custom_call.1']
    #allocation7 [shape = 'u8[65536]{0}', space=vmem, size = 0x10000, scoped, tag = 'input window, operand 2, single buffered']
    #allocation8 [shape = 'u8[512]{0}', space=vmem, size = 0x400, scoped, tag = 'input window, operand 3, single buffered']
    #allocation9 [shape = 's32[1]{0}', space=sflag, size = 0x4, scoped, tag = 'scoped memory for tpu_custom_call.1']
    #allocation10 [shape = 'u8[131072]{0}', space=vmem, size = 0x20000, scoped, tag = 'output window, operand 0, single buffered']
    %9 = vsyncpa [#allocation3], 0
    %10 = vsyncpa [#allocation6], 0
    %11 = vsyncpa [#allocation9], 0
    %12 = vsyncpa [#allocation4], 0
    // Predicated region
    $region2: #{tpu_custom_call.1} parent=1 // pred_check
      _
    $region3: #{tpu_custom_call.1} parent=1 // pred_check_branch
      %14 = sbr.rel (0) target = $region5
    $region4: #{tpu_custom_call.1} parent=1 // pred_region
      %s16 = ssub.s32 4096, 4096
      %17 = vsyncadd [#allocation3], %s16
      %s18 = sshll.u32 [#allocation2], 4
      %s19 = int_to_ptr.vmem [resolvable:$true] %s18
      %24 = dma.hbm_to_vmem [thread:$0]  %s0, 4096, %s19, [#allocation3], 128, 128, 8
    $region5: #{tpu_custom_call.1} parent=1 // pred_fallthru
      _
    // Predicated region
    $region6: #{tpu_custom_call.1} parent=1 // pred_check
      _
    $region7: #{tpu_custom_call.1} parent=1 // pred_check_branch
      %26 = sbr.rel (0) target = $region9
    $region8: #{tpu_custom_call.1} parent=1 // pred_region
      %s28 = ssub.s32 8192, 8192
      %29 = vsyncadd [#allocation6], %s28
      %s30 = sshll.u32 [#allocation5], 4
      %s31 = int_to_ptr.vmem [resolvable:$true] %s30
      %36 = dma.hbm_to_vmem [thread:$0]  %s1, 8192, %s31, [#allocation6], 256, 256, 16
    $region9: #{tpu_custom_call.1} parent=1 // pred_fallthru
      _
    // Predicated region
    $region10: #{tpu_custom_call.1} parent=1 // pred_check
      _
    $region11: #{tpu_custom_call.1} parent=1 // pred_check_branch
      %38 = sbr.rel (0) target = $region13
    $region12: #{tpu_custom_call.1} parent=1 // pred_region
      %s40 = ssub.s32 2048, 2048
      %41 = vsyncadd [#allocation6], %s40
      %s42 = sshll.u32 [#allocation7], 4
      %s43 = int_to_ptr.vmem [resolvable:$true] %s42
      %48 = dma.hbm_to_vmem [thread:$0]  %s2, 2048, %s43, [#allocation6], 128, 128, 8
    $region13: #{tpu_custom_call.1} parent=1 // pred_fallthru
      _
    // Predicated region
    $region14: #{tpu_custom_call.1} parent=1 // pred_check
      _
    $region15: #{tpu_custom_call.1} parent=1 // pred_check_branch
      %50 = sbr.rel (0) target = $region17
    $region16: #{tpu_custom_call.1} parent=1 // pred_region
      %s52 = ssub.s32 16, 16
      %53 = vsyncadd [#allocation9], %s52
      %s55 = sshll.u32 [#allocation8], 4
      %s56 = int_to_ptr.vmem [resolvable:$true] %s55
      %58 = dma.hbm_to_vmem [thread:$0]  %s3, 16, %s56, [#allocation9]
    $region17: #{tpu_custom_call.1} parent=1 // pred_fallthru
      _
    // Predicated region
    $region18: #{tpu_custom_call.1} parent=1 // pred_check
      _
    $region19: #{tpu_custom_call.1} parent=1 // pred_check_branch
      %60 = sbr.rel (0) target = $region21
    $region20: #{tpu_custom_call.1} parent=1 // pred_region
      %61 = dma.done [#allocation3], 4096
    $region21: #{tpu_custom_call.1} parent=1 // pred_fallthru
      _
    // Predicated region
    $region22: #{tpu_custom_call.1} parent=1 // pred_check
      _
    $region23: #{tpu_custom_call.1} parent=1 // pred_check_branch
      %63 = sbr.rel (0) target = $region25
    $region24: #{tpu_custom_call.1} parent=1 // pred_region
      %64 = dma.done [#allocation6], 8192
    $region25: #{tpu_custom_call.1} parent=1 // pred_fallthru
      _
    // Predicated region
    $region26: #{tpu_custom_call.1} parent=1 // pred_check
      _
    $region27: #{tpu_custom_call.1} parent=1 // pred_check_branch
      %66 = sbr.rel (0) target = $region29
    $region28: #{tpu_custom_call.1} parent=1 // pred_region
      %67 = dma.done [#allocation6], 2048
    $region29: #{tpu_custom_call.1} parent=1 // pred_fallthru
      _
    // Predicated region
    $region30: #{tpu_custom_call.1} parent=1 // pred_check
      _
    $region31: #{tpu_custom_call.1} parent=1 // pred_check_branch
      %69 = sbr.rel (0) target = $region33
    $region32: #{tpu_custom_call.1} parent=1 // pred_region
      %70 = dma.done [#allocation9], 16
    $region33: #{tpu_custom_call.1} parent=1 // pred_fallthru
      _
    %v71 = vld [vmem:[#allocation2] sm:$0xff]
    %v72 = vld [vmem:[#allocation2 + $0x8] sm:$0xff]
    %v73 = vld [vmem:[#allocation2 + $0x10] sm:$0xff]
    %v74 = vld [vmem:[#allocation2 + $0x18] sm:$0xff]
    %v75 = vld [vmem:[#allocation2 + $0x20] sm:$0xff]
    %v76 = vld [vmem:[#allocation2 + $0x28] sm:$0xff]
    %v77 = vld [vmem:[#allocation2 + $0x30] sm:$0xff]
    %v78 = vld [vmem:[#allocation2 + $0x38] sm:$0xff]
    %v79 = vld [vmem:[#allocation2 + $0x40] sm:$0xff]
    %v80 = vld [vmem:[#allocation2 + $0x48] sm:$0xff]
    %v81 = vld [vmem:[#allocation2 + $0x50] sm:$0xff]
    %v82 = vld [vmem:[#allocation2 + $0x58] sm:$0xff]
    %v83 = vld [vmem:[#allocation2 + $0x60] sm:$0xff]
    %v84 = vld [vmem:[#allocation2 + $0x68] sm:$0xff]
    %v85 = vld [vmem:[#allocation2 + $0x70] sm:$0xff]
    %v86 = vld [vmem:[#allocation2 + $0x78] sm:$0xff]
    %v87 = vld [vmem:[#allocation2 + $0x80] sm:$0xff]
    %v88 = vld [vmem:[#allocation2 + $0x88] sm:$0xff]
    %v89 = vld [vmem:[#allocation2 + $0x90] sm:$0xff]
    %v90 = vld [vmem:[#allocation2 + $0x98] sm:$0xff]
    %v91 = vld [vmem:[#allocation2 + $0xa0] sm:$0xff]
    %v92 = vld [vmem:[#allocation2 + $0xa8] sm:$0xff]
    %v93 = vld [vmem:[#allocation2 + $0xb0] sm:$0xff]
    %v94 = vld [vmem:[#allocation2 + $0xb8] sm:$0xff]
    %v95 = vld [vmem:[#allocation2 + $0xc0] sm:$0xff]
    %v96 = vld [vmem:[#allocation2 + $0xc8] sm:$0xff]
    %v97 = vld [vmem:[#allocation2 + $0xd0] sm:$0xff]
    %v98 = vld [vmem:[#allocation2 + $0xd8] sm:$0xff]
    %v99 = vld [vmem:[#allocation2 + $0xe0] sm:$0xff]
    %v100 = vld [vmem:[#allocation2 + $0xe8] sm:$0xff]
    %v101 = vld [vmem:[#allocation2 + $0xf0] sm:$0xff]
    %v102 = vld [vmem:[#allocation2 + $0xf8] sm:$0xff]
    %v103 = vld [vmem:[#allocation7] sm:$0xff]
    %v104 = vld [vmem:[#allocation7 + $0x8] sm:$0xff]
    %v105 = vld [vmem:[#allocation7 + $0x10] sm:$0xff]
    %v106 = vld [vmem:[#allocation7 + $0x18] sm:$0xff]
    %v107 = vld [vmem:[#allocation7 + $0x20] sm:$0xff]
    %v108 = vld [vmem:[#allocation7 + $0x28] sm:$0xff]
    %v109 = vld [vmem:[#allocation7 + $0x30] sm:$0xff]
    %v110 = vld [vmem:[#allocation7 + $0x38] sm:$0xff]
    %v111 = vld [vmem:[#allocation7 + $0x40] sm:$0xff]
    %v112 = vld [vmem:[#allocation7 + $0x48] sm:$0xff]
    %v113 = vld [vmem:[#allocation7 + $0x50] sm:$0xff]
    %v114 = vld [vmem:[#allocation7 + $0x58] sm:$0xff]
    %v115 = vld [vmem:[#allocation7 + $0x60] sm:$0xff]
    %v116 = vld [vmem:[#allocation7 + $0x68] sm:$0xff]
    %v117 = vld [vmem:[#allocation7 + $0x70] sm:$0xff]
    %v118 = vld [vmem:[#allocation7 + $0x78] sm:$0xff]
    %119 = vmatprep.subr.mxu0 0.0
    %120 = vmatpush1.msra.mxu0 %v103
    %121 = vmatprep.subr.mxu0 0.0
    %122 = vmatpush1.msra.mxu0 %v104
    %123 = vmatprep.subr.mxu0 0.0
    %124 = vmatpush1.msra.mxu0 %v105
    %125 = vmatprep.subr.mxu0 0.0
    %126 = vmatpush1.msra.mxu0 %v106
    %127 = vmatprep.subr.mxu0 0.0
    %128 = vmatpush1.msra.mxu0 %v107
    %129 = vmatprep.subr.mxu0 0.0
    %130 = vmatpush1.msra.mxu0 %v108
    %131 = vmatprep.subr.mxu0 0.0
    %132 = vmatpush1.msra.mxu0 %v109
    %133 = vmatprep.subr.mxu0 0.0
    %134 = vmatpush1.msra.mxu0 %v110
    %135 = vmatprep.subr.mxu0 0.0
    %136 = vmatpush1.msra.mxu0 %v111
    %137 = vmatprep.subr.mxu0 0.0
    %138 = vmatpush1.msra.mxu0 %v112
    %139 = vmatprep.subr.mxu0 0.0
    %140 = vmatpush1.msra.mxu0 %v113
    %141 = vmatprep.subr.mxu0 0.0
    %142 = vmatpush1.msra.mxu0 %v114
    %143 = vmatprep.subr.mxu0 0.0
    %144 = vmatpush1.msra.mxu0 %v115
    %145 = vmatprep.subr.mxu0 0.0
    %146 = vmatpush1.msra.mxu0 %v116
    %147 = vmatprep.subr.mxu0 0.0
    %148 = vmatpush1.msra.mxu0 %v117
    %149 = vmatprep.subr.mxu0 0.0
    %150 = vmatpush1.msra.mxu0 %v118
    %151 = vmatprep.subr.mxu0 0.0
    %152 = vmatpush1.msra.mxu0 0.0
    %153 = vmatprep.subr.mxu0 0.0
    %154 = vmatpush1.msra.mxu0 0.0
    %155 = vmatprep.subr.mxu0 0.0
    %156 = vmatpush1.msra.mxu0 0.0
    %157 = vmatprep.subr.mxu0 0.0
    %158 = vmatpush1.msra.mxu0 0.0
    %159 = vmatprep.subr.mxu0 0.0
    %160 = vmatpush1.msra.mxu0 0.0
    %161 = vmatprep.subr.mxu0 0.0
    %162 = vmatpush1.msra.mxu0 0.0
    %163 = vmatprep.subr.mxu0 0.0
    %164 = vmatpush1.msra.mxu0 0.0
    %165 = vmatprep.subr.mxu0 0.0
    %166 = vmatpush1.msra.mxu0 0.0
    %167 = vmatprep.subr.mxu0 0.0
    %168 = vmatpush1.msra.mxu0 0.0
    %169 = vmatprep.subr.mxu0 0.0
    %170 = vmatpush1.msra.mxu0 0.0
    %171 = vmatprep.subr.mxu0 0.0
    %172 = vmatpush1.msra.mxu0 0.0
    %173 = vmatprep.subr.mxu0 0.0
    %174 = vmatpush1.msra.mxu0 0.0
    %175 = vmatprep.subr.mxu0 0.0
    %176 = vmatpush1.msra.mxu0 0.0
    %177 = vmatprep.subr.mxu0 0.0
    %178 = vmatpush1.msra.mxu0 0.0
    %179 = vmatprep.subr.mxu0 0.0
    %180 = vmatpush1.msra.mxu0 0.0
    %181 = vmatprep.subr.mxu0 0.0
    %182 = vmatpush1.msra.mxu0 0.0
    %183 = vmatprep.mubr.f32.mxu0 0.0
    %184 = vmatmul.mubr.f32.gmra.mrb[0].mxu0 %v71
    %v185 = vpop.f32.mrb[0].mxu0
    %v186 = vadd.f32 0.0, %v185
    %v187 = vpop.f32.mrb[0].mxu0
    %188 = vmatprep.mubr.f32.mxu0 0.0
    %189 = vmatmul.mubr.f32.gmra.mrb[0].mxu0 %v72
    %v190 = vpop.f32.mrb[0].mxu0
    %v191 = vadd.f32 0.0, %v190
    %v192 = vpop.f32.mrb[0].mxu0
    %193 = vmatprep.mubr.f32.mxu0 0.0
    %194 = vmatmul.mubr.f32.gmra.mrb[0].mxu0 %v73
    %v195 = vpop.f32.mrb[0].mxu0
    %v196 = vadd.f32 0.0, %v195
    %v197 = vpop.f32.mrb[0].mxu0
    %198 = vmatprep.mubr.f32.mxu0 0.0
    %199 = vmatmul.mubr.f32.gmra.mrb[0].mxu0 %v74
    %v200 = vpop.f32.mrb[0].mxu0
    %v201 = vadd.f32 0.0, %v200
    %v202 = vpop.f32.mrb[0].mxu0
    %203 = vmatprep.mubr.f32.mxu0 0.0
    %204 = vmatmul.mubr.f32.gmra.mrb[0].mxu0 %v75
    %v205 = vpop.f32.mrb[0].mxu0
    %v206 = vadd.f32 0.0, %v205
    %v207 = vpop.f32.mrb[0].mxu0
    %208 = vmatprep.mubr.f32.mxu0 0.0
    %209 = vmatmul.mubr.f32.gmra.mrb[0].mxu0 %v76
    %v210 = vpop.f32.mrb[0].mxu0
    %v211 = vadd.f32 0.0, %v210
    %v212 = vpop.f32.mrb[0].mxu0
    %213 = vmatprep.mubr.f32.mxu0 0.0
    %214 = vmatmul.mubr.f32.gmra.mrb[0].mxu0 %v77
    %v215 = vpop.f32.mrb[0].mxu0
    %v216 = vadd.f32 0.0, %v215
    %v217 = vpop.f32.mrb[0].mxu0
    %218 = vmatprep.mubr.f32.mxu0 0.0
    %219 = vmatmul.mubr.f32.gmra.mrb[0].mxu0 %v78
    %v220 = vpop.f32.mrb[0].mxu0
    %v221 = vadd.f32 0.0, %v220
    %v222 = vpop.f32.mrb[0].mxu0
    %223 = vmatprep.mubr.f32.mxu0 0.0
    %224 = vmatmul.mubr.f32.gmra.mrb[0].mxu0 %v79
    %v225 = vpop.f32.mrb[0].mxu0
    %v226 = vadd.f32 0.0, %v225
    %v227 = vpop.f32.mrb[0].mxu0
    %228 = vmatprep.mubr.f32.mxu0 0.0
    %229 = vmatmul.mubr.f32.gmra.mrb[0].mxu0 %v80
    %v230 = vpop.f32.mrb[0].mxu0
    %v231 = vadd.f32 0.0, %v230
    %v232 = vpop.f32.mrb[0].mxu0
    %233 = vmatprep.mubr.f32.mxu0 0.0
    %234 = vmatmul.mubr.f32.gmra.mrb[0].mxu0 %v81
    %v235 = vpop.f32.mrb[0].mxu0
    %v236 = vadd.f32 0.0, %v235
    %v237 = vpop.f32.mrb[0].mxu0
    %238 = vmatprep.mubr.f32.mxu0 0.0
    %239 = vmatmul.mubr.f32.gmra.mrb[0].mxu0 %v82
    %v240 = vpop.f32.mrb[0].mxu0
    %v241 = vadd.f32 0.0, %v240
    %v242 = vpop.f32.mrb[0].mxu0
    %243 = vmatprep.mubr.f32.mxu0 0.0
    %244 = vmatmul.mubr.f32.gmra.mrb[0].mxu0 %v83
    %v245 = vpop.f32.mrb[0].mxu0
    %v246 = vadd.f32 0.0, %v245
    %v247 = vpop.f32.mrb[0].mxu0
    %248 = vmatprep.mubr.f32.mxu0 0.0
    %249 = vmatmul.mubr.f32.gmra.mrb[0].mxu0 %v84
    %v250 = vpop.f32.mrb[0].mxu0
    %v251 = vadd.f32 0.0, %v250
    %v252 = vpop.f32.mrb[0].mxu0
    %253 = vmatprep.mubr.f32.mxu0 0.0
    %254 = vmatmul.mubr.f32.gmra.mrb[0].mxu0 %v85
    %v255 = vpop.f32.mrb[0].mxu0
    %v256 = vadd.f32 0.0, %v255
    %v257 = vpop.f32.mrb[0].mxu0
    %258 = vmatprep.mubr.f32.mxu0 0.0
    %259 = vmatmul.mubr.f32.gmra.mrb[0].mxu0 %v86
    %v260 = vpop.f32.mrb[0].mxu0
    %v261 = vadd.f32 0.0, %v260
    %v262 = vpop.f32.mrb[0].mxu0
    %263 = vmatprep.mubr.f32.mxu0 0.0
    %264 = vmatmul.mubr.f32.gmra.mrb[0].mxu0 %v87
    %v265 = vpop.f32.mrb[0].mxu0
    %v266 = vadd.f32 0.0, %v265
    %v267 = vpop.f32.mrb[0].mxu0
    %268 = vmatprep.mubr.f32.mxu0 0.0
    %269 = vmatmul.mubr.f32.gmra.mrb[0].mxu0 %v88
    %v270 = vpop.f32.mrb[0].mxu0
    %v271 = vadd.f32 0.0, %v270
    %v272 = vpop.f32.mrb[0].mxu0
    %273 = vmatprep.mubr.f32.mxu0 0.0
    %274 = vmatmul.mubr.f32.gmra.mrb[0].mxu0 %v89
    %v275 = vpop.f32.mrb[0].mxu0
    %v276 = vadd.f32 0.0, %v275
    %v277 = vpop.f32.mrb[0].mxu0
    %278 = vmatprep.mubr.f32.mxu0 0.0
    %279 = vmatmul.mubr.f32.gmra.mrb[0].mxu0 %v90
    %v280 = vpop.f32.mrb[0].mxu0
    %v281 = vadd.f32 0.0, %v280
    %v282 = vpop.f32.mrb[0].mxu0
    %283 = vmatprep.mubr.f32.mxu0 0.0
    %284 = vmatmul.mubr.f32.gmra.mrb[0].mxu0 %v91
    %v285 = vpop.f32.mrb[0].mxu0
    %v286 = vadd.f32 0.0, %v285
    %v287 = vpop.f32.mrb[0].mxu0
    %288 = vmatprep.mubr.f32.mxu0 0.0
    %289 = vmatmul.mubr.f32.gmra.mrb[0].mxu0 %v92
    %v290 = vpop.f32.mrb[0].mxu0
    %v291 = vadd.f32 0.0, %v290
    %v292 = vpop.f32.mrb[0].mxu0
    %293 = vmatprep.mubr.f32.mxu0 0.0
    %294 = vmatmul.mubr.f32.gmra.mrb[0].mxu0 %v93
    %v295 = vpop.f32.mrb[0].mxu0
    %v296 = vadd.f32 0.0, %v295
    %v297 = vpop.f32.mrb[0].mxu0
    %298 = vmatprep.mubr.f32.mxu0 0.0
    %299 = vmatmul.mubr.f32.gmra.mrb[0].mxu0 %v94
    %v300 = vpop.f32.mrb[0].mxu0
    %v301 = vadd.f32 0.0, %v300
    %v302 = vpop.f32.mrb[0].mxu0
    %303 = vmatprep.mubr.f32.mxu0 0.0
    %304 = vmatmul.mubr.f32.gmra.mrb[0].mxu0 %v95
    %v305 = vpop.f32.mrb[0].mxu0
    %v306 = vadd.f32 0.0, %v305
    %v307 = vpop.f32.mrb[0].mxu0
    %308 = vmatprep.mubr.f32.mxu0 0.0
    %309 = vmatmul.mubr.f32.gmra.mrb[0].mxu0 %v96
    %v310 = vpop.f32.mrb[0].mxu0
    %v311 = vadd.f32 0.0, %v310
    %v312 = vpop.f32.mrb[0].mxu0
    %313 = vmatprep.mubr.f32.mxu0 0.0
    %314 = vmatmul.mubr.f32.gmra.mrb[0].mxu0 %v97
    %v315 = vpop.f32.mrb[0].mxu0
    %v316 = vadd.f32 0.0, %v315
    %v317 = vpop.f32.mrb[0].mxu0
    %318 = vmatprep.mubr.f32.mxu0 0.0
    %319 = vmatmul.mubr.f32.gmra.mrb[0].mxu0 %v98
    %v320 = vpop.f32.mrb[0].mxu0
    %v321 = vadd.f32 0.0, %v320
    %v322 = vpop.f32.mrb[0].mxu0
    %323 = vmatprep.mubr.f32.mxu0 0.0
    %324 = vmatmul.mubr.f32.gmra.mrb[0].mxu0 %v99
    %v325 = vpop.f32.mrb[0].mxu0
    %v326 = vadd.f32 0.0, %v325
    %v327 = vpop.f32.mrb[0].mxu0
    %328 = vmatprep.mubr.f32.mxu0 0.0
    %329 = vmatmul.mubr.f32.gmra.mrb[0].mxu0 %v100
    %v330 = vpop.f32.mrb[0].mxu0
    %v331 = vadd.f32 0.0, %v330
    %v332 = vpop.f32.mrb[0].mxu0
    %333 = vmatprep.mubr.f32.mxu0 0.0
    %334 = vmatmul.mubr.f32.gmra.mrb[0].mxu0 %v101
    %v335 = vpop.f32.mrb[0].mxu0
    %v336 = vadd.f32 0.0, %v335
    %v337 = vpop.f32.mrb[0].mxu0
    %338 = vmatprep.mubr.f32.mxu0 0.0
    %339 = vmatmul.mubr.f32.gmra.mrb[0].mxu0 %v102
    %v340 = vpop.f32.mrb[0].mxu0
    %v341 = vadd.f32 0.0, %v340
    %v342 = vpop.f32.mrb[0].mxu0
    %343 = vdwg.mxu0
    %v344 = vmul.f32 %v186, 0.033203125
    %v345 = vmul.f32 %v191, 0.033203125
    %v346 = vmul.f32 %v196, 0.033203125
    %v347 = vmul.f32 %v201, 0.033203125
    %v348 = vmul.f32 %v206, 0.033203125
    %v349 = vmul.f32 %v211, 0.033203125
    %v350 = vmul.f32 %v216, 0.033203125
    %v351 = vmul.f32 %v221, 0.033203125
    %v352 = vmul.f32 %v226, 0.033203125
    %v353 = vmul.f32 %v231, 0.033203125
    %v354 = vmul.f32 %v236, 0.033203125
    %v355 = vmul.f32 %v241, 0.033203125
    %v356 = vmul.f32 %v246, 0.033203125
    %v357 = vmul.f32 %v251, 0.033203125
    %v358 = vmul.f32 %v256, 0.033203125
    %v359 = vmul.f32 %v261, 0.033203125
    %v360 = vmul.f32 %v266, 0.033203125
    %v361 = vmul.f32 %v271, 0.033203125
    %v362 = vmul.f32 %v276, 0.033203125
    %v363 = vmul.f32 %v281, 0.033203125
    %v364 = vmul.f32 %v286, 0.033203125
    %v365 = vmul.f32 %v291, 0.033203125
    %v366 = vmul.f32 %v296, 0.033203125
    %v367 = vmul.f32 %v301, 0.033203125
    %v368 = vmul.f32 %v306, 0.033203125
    %v369 = vmul.f32 %v311, 0.033203125
    %v370 = vmul.f32 %v316, 0.033203125
    %v371 = vmul.f32 %v321, 0.033203125
    %v372 = vmul.f32 %v326, 0.033203125
    %v373 = vmul.f32 %v331, 0.033203125
    %v374 = vmul.f32 %v336, 0.033203125
    %v375 = vmul.f32 %v341, 0.033203125
    %v376 = vld [vmem:[#allocation5] sm:$0xff]
    %v377 = vld [vmem:[#allocation5 + $0x8] sm:$0xff]
    %v378 = vld [vmem:[#allocation5 + $0x10] sm:$0xff]
    %v379 = vld [vmem:[#allocation5 + $0x18] sm:$0xff]
    %v380 = vld [vmem:[#allocation5 + $0x20] sm:$0xff]
    %v381 = vld [vmem:[#allocation5 + $0x28] sm:$0xff]
    %v382 = vld [vmem:[#allocation5 + $0x30] sm:$0xff]
    %v383 = vld [vmem:[#allocation5 + $0x38] sm:$0xff]
    %v384 = vld [vmem:[#allocation5 + $0x40] sm:$0xff]
    %v385 = vld [vmem:[#allocation5 + $0x48] sm:$0xff]
    %v386 = vld [vmem:[#allocation5 + $0x50] sm:$0xff]
    %v387 = vld [vmem:[#allocation5 + $0x58] sm:$0xff]
    %v388 = vld [vmem:[#allocation5 + $0x60] sm:$0xff]
    %v389 = vld [vmem:[#allocation5 + $0x68] sm:$0xff]
    %v390 = vld [vmem:[#allocation5 + $0x70] sm:$0xff]
    %v391 = vld [vmem:[#allocation5 + $0x78] sm:$0xff]
    %v392 = vld [vmem:[#allocation5 + $0x80] sm:$0xff]
    %v393 = vld [vmem:[#allocation5 + $0x88] sm:$0xff]
    %v394 = vld [vmem:[#allocation5 + $0x90] sm:$0xff]
    %v395 = vld [vmem:[#allocation5 + $0x98] sm:$0xff]
    %v396 = vld [vmem:[#allocation5 + $0xa0] sm:$0xff]
    %v397 = vld [vmem:[#allocation5 + $0xa8] sm:$0xff]
    %v398 = vld [vmem:[#allocation5 + $0xb0] sm:$0xff]
    %v399 = vld [vmem:[#allocation5 + $0xb8] sm:$0xff]
    %v400 = vld [vmem:[#allocation5 + $0xc0] sm:$0xff]
    %v401 = vld [vmem:[#allocation5 + $0xc8] sm:$0xff]
    %v402 = vld [vmem:[#allocation5 + $0xd0] sm:$0xff]
    %v403 = vld [vmem:[#allocation5 + $0xd8] sm:$0xff]
    %v404 = vld [vmem:[#allocation5 + $0xe0] sm:$0xff]
    %v405 = vld [vmem:[#allocation5 + $0xe8] sm:$0xff]
    %v406 = vld [vmem:[#allocation5 + $0xf0] sm:$0xff]
    %v407 = vld [vmem:[#allocation5 + $0xf8] sm:$0xff]
    %v408 = vld [vmem:[#allocation5 + $0x100] sm:$0xff]
    %v409 = vld [vmem:[#allocation5 + $0x108] sm:$0xff]
    %v410 = vld [vmem:[#allocation5 + $0x110] sm:$0xff]
    %v411 = vld [vmem:[#allocation5 + $0x118] sm:$0xff]
    %v412 = vld [vmem:[#allocation5 + $0x120] sm:$0xff]
    %v413 = vld [vmem:[#allocation5 + $0x128] sm:$0xff]
    %v414 = vld [vmem:[#allocation5 + $0x130] sm:$0xff]
    %v415 = vld [vmem:[#allocation5 + $0x138] sm:$0xff]
    %v416 = vld [vmem:[#allocation5 + $0x140] sm:$0xff]
    %v417 = vld [vmem:[#allocation5 + $0x148] sm:$0xff]
    %v418 = vld [vmem:[#allocation5 + $0x150] sm:$0xff]
    %v419 = vld [vmem:[#allocation5 + $0x158] sm:$0xff]
    %v420 = vld [vmem:[#allocation5 + $0x160] sm:$0xff]
    %v421 = vld [vmem:[#allocation5 + $0x168] sm:$0xff]
    %v422 = vld [vmem:[#allocation5 + $0x170] sm:$0xff]
    %v423 = vld [vmem:[#allocation5 + $0x178] sm:$0xff]
    %v424 = vld [vmem:[#allocation5 + $0x180] sm:$0xff]
    %v425 = vld [vmem:[#allocation5 + $0x188] sm:$0xff]
    %v426 = vld [vmem:[#allocation5 + $0x190] sm:$0xff]
    %v427 = vld [vmem:[#allocation5 + $0x198] sm:$0xff]
    %v428 = vld [vmem:[#allocation5 + $0x1a0] sm:$0xff]
    %v429 = vld [vmem:[#allocation5 + $0x1a8] sm:$0xff]
    %v430 = vld [vmem:[#allocation5 + $0x1b0] sm:$0xff]
    %v431 = vld [vmem:[#allocation5 + $0x1b8] sm:$0xff]
    %v432 = vld [vmem:[#allocation5 + $0x1c0] sm:$0xff]
    %v433 = vld [vmem:[#allocation5 + $0x1c8] sm:$0xff]
    %v434 = vld [vmem:[#allocation5 + $0x1d0] sm:$0xff]
    %v435 = vld [vmem:[#allocation5 + $0x1d8] sm:$0xff]
    %v436 = vld [vmem:[#allocation5 + $0x1e0] sm:$0xff]
    %v437 = vld [vmem:[#allocation5 + $0x1e8] sm:$0xff]
    %v438 = vld [vmem:[#allocation5 + $0x1f0] sm:$0xff]
    %v439 = vld [vmem:[#allocation5 + $0x1f8] sm:$0xff]
    %440 = vmatprep.subr.mxu0 0.0
    %441 = vmatpush1.msra.mxu0 %v186
    %442 = vmatprep.subr.mxu0 0.0
    %443 = vmatpush1.msra.mxu0 %v191
    %444 = vmatprep.subr.mxu0 0.0
    %445 = vmatpush1.msra.mxu0 %v196
    %446 = vmatprep.subr.mxu0 0.0
    %447 = vmatpush1.msra.mxu0 %v201
    %448 = vmatprep.subr.mxu0 0.0
    %449 = vmatpush1.msra.mxu0 %v206
    %450 = vmatprep.subr.mxu0 0.0
    %451 = vmatpush1.msra.mxu0 %v211
    %452 = vmatprep.subr.mxu0 0.0
    %453 = vmatpush1.msra.mxu0 %v216
    %454 = vmatprep.subr.mxu0 0.0
    %455 = vmatpush1.msra.mxu0 %v221
    %456 = vmatprep.subr.mxu0 0.0
    %457 = vmatpush1.msra.mxu0 %v226
    %458 = vmatprep.subr.mxu0 0.0
    %459 = vmatpush1.msra.mxu0 %v231
    %460 = vmatprep.subr.mxu0 0.0
    %461 = vmatpush1.msra.mxu0 %v236
    %462 = vmatprep.subr.mxu0 0.0
    %463 = vmatpush1.msra.mxu0 %v241
    %464 = vmatprep.subr.mxu0 0.0
    %465 = vmatpush1.msra.mxu0 %v246
    %466 = vmatprep.subr.mxu0 0.0
    %467 = vmatpush1.msra.mxu0 %v251
    %468 = vmatprep.subr.mxu0 0.0
    %469 = vmatpush1.msra.mxu0 %v256
    %470 = vmatprep.subr.mxu0 0.0
    %471 = vmatpush1.msra.mxu0 %v261
    %472 = vmatprep.subr.mxu0 0.0
    %473 = vmatpush1.msra.mxu0 %v266
    %474 = vmatprep.subr.mxu0 0.0
    %475 = vmatpush1.msra.mxu0 %v271
    %476 = vmatprep.subr.mxu0 0.0
    %477 = vmatpush1.msra.mxu0 %v276
    %478 = vmatprep.subr.mxu0 0.0
    %479 = vmatpush1.msra.mxu0 %v281
    %480 = vmatprep.subr.mxu0 0.0
    %481 = vmatpush1.msra.mxu0 %v286
    %482 = vmatprep.subr.mxu0 0.0
    %483 = vmatpush1.msra.mxu0 %v291
    %484 = vmatprep.subr.mxu0 0.0
    %485 = vmatpush1.msra.mxu0 %v296
    %486 = vmatprep.subr.mxu0 0.0
    %487 = vmatpush1.msra.mxu0 %v301
    %488 = vmatprep.subr.mxu0 0.0
    %489 = vmatpush1.msra.mxu0 %v306
    %490 = vmatprep.subr.mxu0 0.0
    %491 = vmatpush1.msra.mxu0 %v311
    %492 = vmatprep.subr.mxu0 0.0
    %493 = vmatpush1.msra.mxu0 %v316
    %494 = vmatprep.subr.mxu0 0.0
    %495 = vmatpush1.msra.mxu0 %v321
    %496 = vmatprep.subr.mxu0 0.0
    %497 = vmatpush1.msra.mxu0 %v326
    %498 = vmatprep.subr.mxu0 0.0
    %499 = vmatpush1.msra.mxu0 %v331
    %500 = vmatprep.subr.mxu0 0.0
    %501 = vmatpush1.msra.mxu0 %v336
    %502 = vmatprep.subr.mxu0 0.0
    %503 = vmatpush1.msra.mxu0 %v341
    %504 = vmatprep.mubr.f32.mxu0 %v377
    %505 = vmatmul.mubr.f32.gmra.mrb[0].mxu0 %v376
    %v506 = vpop.f32.mrb[0].mxu0
    %v507 = vadd.f32 0.0, %v506
    %v508 = vpop.f32.mrb[0].mxu0
    %509 = vmatprep.mubr.f32.mxu0 %v379
    %510 = vmatmul.mubr.f32.gmra.mrb[0].mxu0 %v378
    %v511 = vpop.f32.mrb[0].mxu0
    %v512 = vadd.f32 0.0, %v511
    %v513 = vpop.f32.mrb[0].mxu0
    %514 = vmatprep.mubr.f32.mxu0 %v381
    %515 = vmatmul.mubr.f32.gmra.mrb[0].mxu0 %v380
    %v516 = vpop.f32.mrb[0].mxu0
    %v517 = vadd.f32 0.0, %v516
    %v518 = vpop.f32.mrb[0].mxu0
    %519 = vmatprep.mubr.f32.mxu0 %v383
    %520 = vmatmul.mubr.f32.gmra.mrb[0].mxu0 %v382
    %v521 = vpop.f32.mrb[0].mxu0
    %v522 = vadd.f32 0.0, %v521
    %v523 = vpop.f32.mrb[0].mxu0
    %524 = vmatprep.mubr.f32.mxu0 %v385
    %525 = vmatmul.mubr.f32.gmra.mrb[0].mxu0 %v384
    %v526 = vpop.f32.mrb[0].mxu0
    %v527 = vadd.f32 0.0, %v526
    %v528 = vpop.f32.mrb[0].mxu0
    %529 = vmatprep.mubr.f32.mxu0 %v387
    %530 = vmatmul.mubr.f32.gmra.mrb[0].mxu0 %v386
    %v531 = vpop.f32.mrb[0].mxu0
    %v532 = vadd.f32 0.0, %v531
    %v533 = vpop.f32.mrb[0].mxu0
    %534 = vmatprep.mubr.f32.mxu0 %v389
    %535 = vmatmul.mubr.f32.gmra.mrb[0].mxu0 %v388
    %v536 = vpop.f32.mrb[0].mxu0
    %v537 = vadd.f32 0.0, %v536
    %v538 = vpop.f32.mrb[0].mxu0
    %539 = vmatprep.mubr.f32.mxu0 %v391
    %540 = vmatmul.mubr.f32.gmra.mrb[0].mxu0 %v390
    %v541 = vpop.f32.mrb[0].mxu0
    %v542 = vadd.f32 0.0, %v541
    %v543 = vpop.f32.mrb[0].mxu0
    %544 = vmatprep.mubr.f32.mxu0 %v393
    %545 = vmatmul.mubr.f32.gmra.mrb[0].mxu0 %v392
    %v546 = vpop.f32.mrb[0].mxu0
    %v547 = vadd.f32 0.0, %v546
    %v548 = vpop.f32.mrb[0].mxu0
    %549 = vmatprep.mubr.f32.mxu0 %v395
    %550 = vmatmul.mubr.f32.gmra.mrb[0].mxu0 %v394
    %v551 = vpop.f32.mrb[0].mxu0
    %v552 = vadd.f32 0.0, %v551
    %v553 = vpop.f32.mrb[0].mxu0
    %554 = vmatprep.mubr.f32.mxu0 %v397
    %555 = vmatmul.mubr.f32.gmra.mrb[0].mxu0 %v396
    %v556 = vpop.f32.mrb[0].mxu0
    %v557 = vadd.f32 0.0, %v556
    %v558 = vpop.f32.mrb[0].mxu0
    %559 = vmatprep.mubr.f32.mxu0 %v399
    %560 = vmatmul.mubr.f32.gmra.mrb[0].mxu0 %v398
    %v561 = vpop.f32.mrb[0].mxu0
    %v562 = vadd.f32 0.0, %v561
    %v563 = vpop.f32.mrb[0].mxu0
    %564 = vmatprep.mubr.f32.mxu0 %v401
    %565 = vmatmul.mubr.f32.gmra.mrb[0].mxu0 %v400
    %v566 = vpop.f32.mrb[0].mxu0
    %v567 = vadd.f32 0.0, %v566
    %v568 = vpop.f32.mrb[0].mxu0
    %569 = vmatprep.mubr.f32.mxu0 %v403
    %570 = vmatmul.mubr.f32.gmra.mrb[0].mxu0 %v402
    %v571 = vpop.f32.mrb[0].mxu0
    %v572 = vadd.f32 0.0, %v571
    %v573 = vpop.f32.mrb[0].mxu0
    %574 = vmatprep.mubr.f32.mxu0 %v405
    %575 = vmatmul.mubr.f32.gmra.mrb[0].mxu0 %v404
    %v576 = vpop.f32.mrb[0].mxu0
    %v577 = vadd.f32 0.0, %v576
    %v578 = vpop.f32.mrb[0].mxu0
    %579 = vmatprep.mubr.f32.mxu0 %v407
    %580 = vmatmul.mubr.f32.gmra.mrb[0].mxu0 %v406
    %v581 = vpop.f32.mrb[0].mxu0
    %v582 = vadd.f32 0.0, %v581
    %v583 = vpop.f32.mrb[0].mxu0
    %584 = vmatprep.mubr.f32.mxu0 %v409
    %585 = vmatmul.mubr.f32.gmra.mrb[0].mxu0 %v408
    %v586 = vpop.f32.mrb[0].mxu0
    %v587 = vadd.f32 0.0, %v586
    %v588 = vpop.f32.mrb[0].mxu0
    %589 = vmatprep.mubr.f32.mxu0 %v411
    %590 = vmatmul.mubr.f32.gmra.mrb[0].mxu0 %v410
    %v591 = vpop.f32.mrb[0].mxu0
    %v592 = vadd.f32 0.0, %v591
    %v593 = vpop.f32.mrb[0].mxu0
    %594 = vmatprep.mubr.f32.mxu0 %v413
    %595 = vmatmul.mubr.f32.gmra.mrb[0].mxu0 %v412
    %v596 = vpop.f32.mrb[0].mxu0
    %v597 = vadd.f32 0.0, %v596
    %v598 = vpop.f32.mrb[0].mxu0
    %599 = vmatprep.mubr.f32.mxu0 %v415
    %600 = vmatmul.mubr.f32.gmra.mrb[0].mxu0 %v414
    %v601 = vpop.f32.mrb[0].mxu0
    %v602 = vadd.f32 0.0, %v601
    %v603 = vpop.f32.mrb[0].mxu0
    %604 = vmatprep.mubr.f32.mxu0 %v417
    %605 = vmatmul.mubr.f32.gmra.mrb[0].mxu0 %v416
    %v606 = vpop.f32.mrb[0].mxu0
    %v607 = vadd.f32 0.0, %v606
    %v608 = vpop.f32.mrb[0].mxu0
    %609 = vmatprep.mubr.f32.mxu0 %v419
    %610 = vmatmul.mubr.f32.gmra.mrb[0].mxu0 %v418
    %v611 = vpop.f32.mrb[0].mxu0
    %v612 = vadd.f32 0.0, %v611
    %v613 = vpop.f32.mrb[0].mxu0
    %614 = vmatprep.mubr.f32.mxu0 %v421
    %615 = vmatmul.mubr.f32.gmra.mrb[0].mxu0 %v420
    %v616 = vpop.f32.mrb[0].mxu0
    %v617 = vadd.f32 0.0, %v616
    %v618 = vpop.f32.mrb[0].mxu0
    %619 = vmatprep.mubr.f32.mxu0 %v423
    %620 = vmatmul.mubr.f32.gmra.mrb[0].mxu0 %v422
    %v621 = vpop.f32.mrb[0].mxu0
    %v622 = vadd.f32 0.0, %v621
    %v623 = vpop.f32.mrb[0].mxu0
    %624 = vmatprep.mubr.f32.mxu0 %v425
    %625 = vmatmul.mubr.f32.gmra.mrb[0].mxu0 %v424
    %v626 = vpop.f32.mrb[0].mxu0
    %v627 = vadd.f32 0.0, %v626
    %v628 = vpop.f32.mrb[0].mxu0
    %629 = vmatprep.mubr.f32.mxu0 %v427
    %630 = vmatmul.mubr.f32.gmra.mrb[0].mxu0 %v426
    %v631 = vpop.f32.mrb[0].mxu0
    %v632 = vadd.f32 0.0, %v631
    %v633 = vpop.f32.mrb[0].mxu0
    %634 = vmatprep.mubr.f32.mxu0 %v429
    %635 = vmatmul.mubr.f32.gmra.mrb[0].mxu0 %v428
    %v636 = vpop.f32.mrb[0].mxu0
    %v637 = vadd.f32 0.0, %v636
    %v638 = vpop.f32.mrb[0].mxu0
    %639 = vmatprep.mubr.f32.mxu0 %v431
    %640 = vmatmul.mubr.f32.gmra.mrb[0].mxu0 %v430
    %v641 = vpop.f32.mrb[0].mxu0
    %v642 = vadd.f32 0.0, %v641
    %v643 = vpop.f32.mrb[0].mxu0
    %644 = vmatprep.mubr.f32.mxu0 %v433
    %645 = vmatmul.mubr.f32.gmra.mrb[0].mxu0 %v432
    %v646 = vpop.f32.mrb[0].mxu0
    %v647 = vadd.f32 0.0, %v646
    %v648 = vpop.f32.mrb[0].mxu0
    %649 = vmatprep.mubr.f32.mxu0 %v435
    %650 = vmatmul.mubr.f32.gmra.mrb[0].mxu0 %v434
    %v651 = vpop.f32.mrb[0].mxu0
    %v652 = vadd.f32 0.0, %v651
    %v653 = vpop.f32.mrb[0].mxu0
    %654 = vmatprep.mubr.f32.mxu0 %v437
    %655 = vmatmul.mubr.f32.gmra.mrb[0].mxu0 %v436
    %v656 = vpop.f32.mrb[0].mxu0
    %v657 = vadd.f32 0.0, %v656
    %v658 = vpop.f32.mrb[0].mxu0
    %659 = vmatprep.mubr.f32.mxu0 %v439
    %660 = vmatmul.mubr.f32.gmra.mrb[0].mxu0 %v438
    %v661 = vpop.f32.mrb[0].mxu0
    %v662 = vadd.f32 0.0, %v661
    %v663 = vpop.f32.mrb[0].mxu0
    %664 = vdwg.mxu0
    %v665 = vmul.f32 %v507, 0.003515625
    %v666 = vmul.f32 %v512, 0.003515625
    %v667 = vmul.f32 %v517, 0.003515625
    %v668 = vmul.f32 %v522, 0.003515625
    %v669 = vmul.f32 %v527, 0.003515625
    %v670 = vmul.f32 %v532, 0.003515625
    %v671 = vmul.f32 %v537, 0.003515625
    %v672 = vmul.f32 %v542, 0.003515625
    %v673 = vmul.f32 %v547, 0.003515625
    %v674 = vmul.f32 %v552, 0.003515625
    %v675 = vmul.f32 %v557, 0.003515625
    %v676 = vmul.f32 %v562, 0.003515625
    %v677 = vmul.f32 %v567, 0.003515625
    %v678 = vmul.f32 %v572, 0.003515625
    %v679 = vmul.f32 %v577, 0.003515625
    %v680 = vmul.f32 %v582, 0.003515625
    %v681 = vmul.f32 %v587, 0.003515625
    %v682 = vmul.f32 %v592, 0.003515625
    %v683 = vmul.f32 %v597, 0.003515625
    %v684 = vmul.f32 %v602, 0.003515625
    %v685 = vmul.f32 %v607, 0.003515625
    %v686 = vmul.f32 %v612, 0.003515625
    %v687 = vmul.f32 %v617, 0.003515625
    %v688 = vmul.f32 %v622, 0.003515625
    %v689 = vmul.f32 %v627, 0.003515625
    %v690 = vmul.f32 %v632, 0.003515625
    %v691 = vmul.f32 %v637, 0.003515625
    %v692 = vmul.f32 %v642, 0.003515625
    %v693 = vmul.f32 %v647, 0.003515625
    %v694 = vmul.f32 %v652, 0.003515625
    %v695 = vmul.f32 %v657, 0.003515625
    %v696 = vmul.f32 %v662, 0.003515625
    %v697 = vadd.f32 %v344, %v665
    %v698 = vadd.f32 %v345, %v666
    %v699 = vadd.f32 %v346, %v667
    %v700 = vadd.f32 %v347, %v668
    %v701 = vadd.f32 %v348, %v669
    %v702 = vadd.f32 %v349, %v670
    %v703 = vadd.f32 %v350, %v671
    %v704 = vadd.f32 %v351, %v672
    %v705 = vadd.f32 %v352, %v673
    %v706 = vadd.f32 %v353, %v674
    %v707 = vadd.f32 %v354, %v675
    %v708 = vadd.f32 %v355, %v676
    %v709 = vadd.f32 %v356, %v677
    %v710 = vadd.f32 %v357, %v678
    %v711 = vadd.f32 %v358, %v679
    %v712 = vadd.f32 %v359, %v680
    %v713 = vadd.f32 %v360, %v681
    %v714 = vadd.f32 %v361, %v682
    %v715 = vadd.f32 %v362, %v683
    %v716 = vadd.f32 %v363, %v684
    %v717 = vadd.f32 %v364, %v685
    %v718 = vadd.f32 %v365, %v686
    %v719 = vadd.f32 %v366, %v687
    %v720 = vadd.f32 %v367, %v688
    %v721 = vadd.f32 %v368, %v689
    %v722 = vadd.f32 %v369, %v690
    %v723 = vadd.f32 %v370, %v691
    %v724 = vadd.f32 %v371, %v692
    %v725 = vadd.f32 %v372, %v693
    %v726 = vadd.f32 %v373, %v694
    %v727 = vadd.f32 %v374, %v695
    %v728 = vadd.f32 %v375, %v696
    %729 = vmatprep.subr.mxu0 0.0
    %730 = vmatpush1.msra.mxu0 %v507
    %731 = vmatprep.subr.mxu0 0.0
    %732 = vmatpush1.msra.mxu0 %v512
    %733 = vmatprep.subr.mxu0 0.0
    %734 = vmatpush1.msra.mxu0 %v517
    %735 = vmatprep.subr.mxu0 0.0
    %736 = vmatpush1.msra.mxu0 %v522
    %737 = vmatprep.subr.mxu0 0.0
    %738 = vmatpush1.msra.mxu0 %v527
    %739 = vmatprep.subr.mxu0 0.0
    %740 = vmatpush1.msra.mxu0 %v532
    %741 = vmatprep.subr.mxu0 0.0
    %742 = vmatpush1.msra.mxu0 %v537
    %743 = vmatprep.subr.mxu0 0.0
    %744 = vmatpush1.msra.mxu0 %v542
    %745 = vmatprep.subr.mxu0 0.0
    %746 = vmatpush1.msra.mxu0 %v547
    %747 = vmatprep.subr.mxu0 0.0
    %748 = vmatpush1.msra.mxu0 %v552
    %749 = vmatprep.subr.mxu0 0.0
    %750 = vmatpush1.msra.mxu0 %v557
    %751 = vmatprep.subr.mxu0 0.0
    %752 = vmatpush1.msra.mxu0 %v562
    %753 = vmatprep.subr.mxu0 0.0
    %754 = vmatpush1.msra.mxu0 %v567
    %755 = vmatprep.subr.mxu0 0.0
    %756 = vmatpush1.msra.mxu0 %v572
    %757 = vmatprep.subr.mxu0 0.0
    %758 = vmatpush1.msra.mxu0 %v577
    %759 = vmatprep.subr.mxu0 0.0
    %760 = vmatpush1.msra.mxu0 %v582
    %761 = vmatprep.subr.mxu0 0.0
    %762 = vmatpush1.msra.mxu0 %v587
    %763 = vmatprep.subr.mxu0 0.0
    %764 = vmatpush1.msra.mxu0 %v592
    %765 = vmatprep.subr.mxu0 0.0
    %766 = vmatpush1.msra.mxu0 %v597
    %767 = vmatprep.subr.mxu0 0.0
    %768 = vmatpush1.msra.mxu0 %v602
    %769 = vmatprep.subr.mxu0 0.0
    %770 = vmatpush1.msra.mxu0 %v607
    %771 = vmatprep.subr.mxu0 0.0
    %772 = vmatpush1.msra.mxu0 %v612
    %773 = vmatprep.subr.mxu0 0.0
    %774 = vmatpush1.msra.mxu0 %v617
    %775 = vmatprep.subr.mxu0 0.0
    %776 = vmatpush1.msra.mxu0 %v622
    %777 = vmatprep.subr.mxu0 0.0
    %778 = vmatpush1.msra.mxu0 %v627
    %779 = vmatprep.subr.mxu0 0.0
    %780 = vmatpush1.msra.mxu0 %v632
    %781 = vmatprep.subr.mxu0 0.0
    %782 = vmatpush1.msra.mxu0 %v637
    %783 = vmatprep.subr.mxu0 0.0
    %784 = vmatpush1.msra.mxu0 %v642
    %785 = vmatprep.subr.mxu0 0.0
    %786 = vmatpush1.msra.mxu0 %v647
    %787 = vmatprep.subr.mxu0 0.0
    %788 = vmatpush1.msra.mxu0 %v652
    %789 = vmatprep.subr.mxu0 0.0
    %790 = vmatpush1.msra.mxu0 %v657
    %791 = vmatprep.subr.mxu0 0.0
    %792 = vmatpush1.msra.mxu0 %v662
    %793 = vmatprep.mubr.f32.mxu0 %v377
    %794 = vmatmul.mubr.f32.gmra.mrb[0].mxu0 %v376
    %v795 = vpop.f32.mrb[0].mxu0
    %v796 = vadd.f32 0.0, %v795
    %v797 = vpop.f32.mrb[0].mxu0
    %798 = vmatprep.mubr.f32.mxu0 %v379
    %799 = vmatmul.mubr.f32.gmra.mrb[0].mxu0 %v378
    %v800 = vpop.f32.mrb[0].mxu0
    %v801 = vadd.f32 0.0, %v800
    %v802 = vpop.f32.mrb[0].mxu0
    %803 = vmatprep.mubr.f32.mxu0 %v381
    %804 = vmatmul.mubr.f32.gmra.mrb[0].mxu0 %v380
    %v805 = vpop.f32.mrb[0].mxu0
    %v806 = vadd.f32 0.0, %v805
    %v807 = vpop.f32.mrb[0].mxu0
    %808 = vmatprep.mubr.f32.mxu0 %v383
    %809 = vmatmul.mubr.f32.gmra.mrb[0].mxu0 %v382
    %v810 = vpop.f32.mrb[0].mxu0
    %v811 = vadd.f32 0.0, %v810
    %v812 = vpop.f32.mrb[0].mxu0
    %813 = vmatprep.mubr.f32.mxu0 %v385
    %814 = vmatmul.mubr.f32.gmra.mrb[0].mxu0 %v384
    %v815 = vpop.f32.mrb[0].mxu0
    %v816 = vadd.f32 0.0, %v815
    %v817 = vpop.f32.mrb[0].mxu0
    %818 = vmatprep.mubr.f32.mxu0 %v387
    %819 = vmatmul.mubr.f32.gmra.mrb[0].mxu0 %v386
    %v820 = vpop.f32.mrb[0].mxu0
    %v821 = vadd.f32 0.0, %v820
    %v822 = vpop.f32.mrb[0].mxu0
    %823 = vmatprep.mubr.f32.mxu0 %v389
    %824 = vmatmul.mubr.f32.gmra.mrb[0].mxu0 %v388
    %v825 = vpop.f32.mrb[0].mxu0
    %v826 = vadd.f32 0.0, %v825
    %v827 = vpop.f32.mrb[0].mxu0
    %828 = vmatprep.mubr.f32.mxu0 %v391
    %829 = vmatmul.mubr.f32.gmra.mrb[0].mxu0 %v390
    %v830 = vpop.f32.mrb[0].mxu0
    %v831 = vadd.f32 0.0, %v830
    %v832 = vpop.f32.mrb[0].mxu0
    %833 = vmatprep.mubr.f32.mxu0 %v393
    %834 = vmatmul.mubr.f32.gmra.mrb[0].mxu0 %v392
    %v835 = vpop.f32.mrb[0].mxu0
    %v836 = vadd.f32 0.0, %v835
    %v837 = vpop.f32.mrb[0].mxu0
    %838 = vmatprep.mubr.f32.mxu0 %v395
    %839 = vmatmul.mubr.f32.gmra.mrb[0].mxu0 %v394
    %v840 = vpop.f32.mrb[0].mxu0
    %v841 = vadd.f32 0.0, %v840
    %v842 = vpop.f32.mrb[0].mxu0
    %843 = vmatprep.mubr.f32.mxu0 %v397
    %844 = vmatmul.mubr.f32.gmra.mrb[0].mxu0 %v396
    %v845 = vpop.f32.mrb[0].mxu0
    %v846 = vadd.f32 0.0, %v845
    %v847 = vpop.f32.mrb[0].mxu0
    %848 = vmatprep.mubr.f32.mxu0 %v399
    %849 = vmatmul.mubr.f32.gmra.mrb[0].mxu0 %v398
    %v850 = vpop.f32.mrb[0].mxu0
    %v851 = vadd.f32 0.0, %v850
    %v852 = vpop.f32.mrb[0].mxu0
    %853 = vmatprep.mubr.f32.mxu0 %v401
    %854 = vmatmul.mubr.f32.gmra.mrb[0].mxu0 %v400
    %v855 = vpop.f32.mrb[0].mxu0
    %v856 = vadd.f32 0.0, %v855
    %v857 = vpop.f32.mrb[0].mxu0
    %858 = vmatprep.mubr.f32.mxu0 %v403
    %859 = vmatmul.mubr.f32.gmra.mrb[0].mxu0 %v402
    %v860 = vpop.f32.mrb[0].mxu0
    %v861 = vadd.f32 0.0, %v860
    %v862 = vpop.f32.mrb[0].mxu0
    %863 = vmatprep.mubr.f32.mxu0 %v405
    %864 = vmatmul.mubr.f32.gmra.mrb[0].mxu0 %v404
    %v865 = vpop.f32.mrb[0].mxu0
    %v866 = vadd.f32 0.0, %v865
    %v867 = vpop.f32.mrb[0].mxu0
    %868 = vmatprep.mubr.f32.mxu0 %v407
    %869 = vmatmul.mubr.f32.gmra.mrb[0].mxu0 %v406
    %v870 = vpop.f32.mrb[0].mxu0
    %v871 = vadd.f32 0.0, %v870
    %v872 = vpop.f32.mrb[0].mxu0
    %873 = vmatprep.mubr.f32.mxu0 %v409
    %874 = vmatmul.mubr.f32.gmra.mrb[0].mxu0 %v408
    %v875 = vpop.f32.mrb[0].mxu0
    %v876 = vadd.f32 0.0, %v875
    %v877 = vpop.f32.mrb[0].mxu0
    %878 = vmatprep.mubr.f32.mxu0 %v411
    %879 = vmatmul.mubr.f32.gmra.mrb[0].mxu0 %v410
    %v880 = vpop.f32.mrb[0].mxu0
    %v881 = vadd.f32 0.0, %v880
    %v882 = vpop.f32.mrb[0].mxu0
    %883 = vmatprep.mubr.f32.mxu0 %v413
    %884 = vmatmul.mubr.f32.gmra.mrb[0].mxu0 %v412
    %v885 = vpop.f32.mrb[0].mxu0
    %v886 = vadd.f32 0.0, %v885
    %v887 = vpop.f32.mrb[0].mxu0
    %888 = vmatprep.mubr.f32.mxu0 %v415
    %889 = vmatmul.mubr.f32.gmra.mrb[0].mxu0 %v414
    %v890 = vpop.f32.mrb[0].mxu0
    %v891 = vadd.f32 0.0, %v890
    %v892 = vpop.f32.mrb[0].mxu0
    %893 = vmatprep.mubr.f32.mxu0 %v417
    %894 = vmatmul.mubr.f32.gmra.mrb[0].mxu0 %v416
    %v895 = vpop.f32.mrb[0].mxu0
    %v896 = vadd.f32 0.0, %v895
    %v897 = vpop.f32.mrb[0].mxu0
    %898 = vmatprep.mubr.f32.mxu0 %v419
    %899 = vmatmul.mubr.f32.gmra.mrb[0].mxu0 %v418
    %v900 = vpop.f32.mrb[0].mxu0
    %v901 = vadd.f32 0.0, %v900
    %v902 = vpop.f32.mrb[0].mxu0
    %903 = vmatprep.mubr.f32.mxu0 %v421
    %904 = vmatmul.mubr.f32.gmra.mrb[0].mxu0 %v420
    %v905 = vpop.f32.mrb[0].mxu0
    %v906 = vadd.f32 0.0, %v905
    %v907 = vpop.f32.mrb[0].mxu0
    %908 = vmatprep.mubr.f32.mxu0 %v423
    %909 = vmatmul.mubr.f32.gmra.mrb[0].mxu0 %v422
    %v910 = vpop.f32.mrb[0].mxu0
    %v911 = vadd.f32 0.0, %v910
    %v912 = vpop.f32.mrb[0].mxu0
    %913 = vmatprep.mubr.f32.mxu0 %v425
    %914 = vmatmul.mubr.f32.gmra.mrb[0].mxu0 %v424
    %v915 = vpop.f32.mrb[0].mxu0
    %v916 = vadd.f32 0.0, %v915
    %v917 = vpop.f32.mrb[0].mxu0
    %918 = vmatprep.mubr.f32.mxu0 %v427
    %919 = vmatmul.mubr.f32.gmra.mrb[0].mxu0 %v426
    %v920 = vpop.f32.mrb[0].mxu0
    %v921 = vadd.f32 0.0, %v920
    %v922 = vpop.f32.mrb[0].mxu0
    %923 = vmatprep.mubr.f32.mxu0 %v429
    %924 = vmatmul.mubr.f32.gmra.mrb[0].mxu0 %v428
    %v925 = vpop.f32.mrb[0].mxu0
    %v926 = vadd.f32 0.0, %v925
    %v927 = vpop.f32.mrb[0].mxu0
    %928 = vmatprep.mubr.f32.mxu0 %v431
    %929 = vmatmul.mubr.f32.gmra.mrb[0].mxu0 %v430
    %v930 = vpop.f32.mrb[0].mxu0
    %v931 = vadd.f32 0.0, %v930
    %v932 = vpop.f32.mrb[0].mxu0
    %933 = vmatprep.mubr.f32.mxu0 %v433
    %934 = vmatmul.mubr.f32.gmra.mrb[0].mxu0 %v432
    %v935 = vpop.f32.mrb[0].mxu0
    %v936 = vadd.f32 0.0, %v935
    %v937 = vpop.f32.mrb[0].mxu0
    %938 = vmatprep.mubr.f32.mxu0 %v435
    %939 = vmatmul.mubr.f32.gmra.mrb[0].mxu0 %v434
    %v940 = vpop.f32.mrb[0].mxu0
    %v941 = vadd.f32 0.0, %v940
    %v942 = vpop.f32.mrb[0].mxu0
    %943 = vmatprep.mubr.f32.mxu0 %v437
    %944 = vmatmul.mubr.f32.gmra.mrb[0].mxu0 %v436
    %v945 = vpop.f32.mrb[0].mxu0
    %v946 = vadd.f32 0.0, %v945
    %v947 = vpop.f32.mrb[0].mxu0
    %948 = vmatprep.mubr.f32.mxu0 %v439
    %949 = vmatmul.mubr.f32.gmra.mrb[0].mxu0 %v438
    %v950 = vpop.f32.mrb[0].mxu0
    %v951 = vadd.f32 0.0, %v950
    %v952 = vpop.f32.mrb[0].mxu0
    %953 = vdwg.mxu0
    %v954 = vmul.f32 %v796, 0.0140625
    %v955 = vmul.f32 %v801, 0.0140625
    %v956 = vmul.f32 %v806, 0.0140625
    %v957 = vmul.f32 %v811, 0.0140625
    %v958 = vmul.f32 %v816, 0.0140625
    %v959 = vmul.f32 %v821, 0.0140625
    %v960 = vmul.f32 %v826, 0.0140625
    %v961 = vmul.f32 %v831, 0.0140625
    %v962 = vmul.f32 %v836, 0.0140625
    %v963 = vmul.f32 %v841, 0.0140625
    %v964 = vmul.f32 %v846, 0.0140625
    %v965 = vmul.f32 %v851, 0.0140625
    %v966 = vmul.f32 %v856, 0.0140625
    %v967 = vmul.f32 %v861, 0.0140625
    %v968 = vmul.f32 %v866, 0.0140625
    %v969 = vmul.f32 %v871, 0.0140625
    %v970 = vmul.f32 %v876, 0.0140625
    %v971 = vmul.f32 %v881, 0.0140625
    %v972 = vmul.f32 %v886, 0.0140625
    %v973 = vmul.f32 %v891, 0.0140625
    %v974 = vmul.f32 %v896, 0.0140625
    %v975 = vmul.f32 %v901, 0.0140625
    %v976 = vmul.f32 %v906, 0.0140625
    %v977 = vmul.f32 %v911, 0.0140625
    %v978 = vmul.f32 %v916, 0.0140625
    %v979 = vmul.f32 %v921, 0.0140625
    %v980 = vmul.f32 %v926, 0.0140625
    %v981 = vmul.f32 %v931, 0.0140625
    %v982 = vmul.f32 %v936, 0.0140625
    %v983 = vmul.f32 %v941, 0.0140625
    %v984 = vmul.f32 %v946, 0.0140625
    %v985 = vmul.f32 %v951, 0.0140625
    %v986 = vadd.f32 %v697, %v954
    %v987 = vadd.f32 %v698, %v955
    %v988 = vadd.f32 %v699, %v956
    %v989 = vadd.f32 %v700, %v957
    %v990 = vadd.f32 %v701, %v958
    %v991 = vadd.f32 %v702, %v959
    %v992 = vadd.f32 %v703, %v960
    %v993 = vadd.f32 %v704, %v961
    %v994 = vadd.f32 %v705, %v962
    %v995 = vadd.f32 %v706, %v963
    %v996 = vadd.f32 %v707, %v964
    %v997 = vadd.f32 %v708, %v965
    %v998 = vadd.f32 %v709, %v966
    %v999 = vadd.f32 %v710, %v967
    %v1000 = vadd.f32 %v711, %v968
    %v1001 = vadd.f32 %v712, %v969
    %v1002 = vadd.f32 %v713, %v970
    %v1003 = vadd.f32 %v714, %v971
    %v1004 = vadd.f32 %v715, %v972
    %v1005 = vadd.f32 %v716, %v973
    %v1006 = vadd.f32 %v717, %v974
    %v1007 = vadd.f32 %v718, %v975
    %v1008 = vadd.f32 %v719, %v976
    %v1009 = vadd.f32 %v720, %v977
    %v1010 = vadd.f32 %v721, %v978
    %v1011 = vadd.f32 %v722, %v979
    %v1012 = vadd.f32 %v723, %v980
    %v1013 = vadd.f32 %v724, %v981
    %v1014 = vadd.f32 %v725, %v982
    %v1015 = vadd.f32 %v726, %v983
    %v1016 = vadd.f32 %v727, %v984
    %v1017 = vadd.f32 %v728, %v985
    %1018 = vmatprep.subr.mxu0 0.0
    %1019 = vmatpush1.msra.mxu0 %v796
    %1020 = vmatprep.subr.mxu0 0.0
    %1021 = vmatpush1.msra.mxu0 %v801
    %1022 = vmatprep.subr.mxu0 0.0
    %1023 = vmatpush1.msra.mxu0 %v806
    %1024 = vmatprep.subr.mxu0 0.0
    %1025 = vmatpush1.msra.mxu0 %v811
    %1026 = vmatprep.subr.mxu0 0.0
    %1027 = vmatpush1.msra.mxu0 %v816
    %1028 = vmatprep.subr.mxu0 0.0
    %1029 = vmatpush1.msra.mxu0 %v821
    %1030 = vmatprep.subr.mxu0 0.0
    %1031 = vmatpush1.msra.mxu0 %v826
    %1032 = vmatprep.subr.mxu0 0.0
    %1033 = vmatpush1.msra.mxu0 %v831
    %1034 = vmatprep.subr.mxu0 0.0
    %1035 = vmatpush1.msra.mxu0 %v836
    %1036 = vmatprep.subr.mxu0 0.0
    %1037 = vmatpush1.msra.mxu0 %v841
    %1038 = vmatprep.subr.mxu0 0.0
    %1039 = vmatpush1.msra.mxu0 %v846
    %1040 = vmatprep.subr.mxu0 0.0
    %1041 = vmatpush1.msra.mxu0 %v851
    %1042 = vmatprep.subr.mxu0 0.0
    %1043 = vmatpush1.msra.mxu0 %v856
    %1044 = vmatprep.subr.mxu0 0.0
    %1045 = vmatpush1.msra.mxu0 %v861
    %1046 = vmatprep.subr.mxu0 0.0
    %1047 = vmatpush1.msra.mxu0 %v866
    %1048 = vmatprep.subr.mxu0 0.0
    %1049 = vmatpush1.msra.mxu0 %v871
    %1050 = vmatprep.subr.mxu0 0.0
    %1051 = vmatpush1.msra.mxu0 %v876
    %1052 = vmatprep.subr.mxu0 0.0
    %1053 = vmatpush1.msra.mxu0 %v881
    %1054 = vmatprep.subr.mxu0 0.0
    %1055 = vmatpush1.msra.mxu0 %v886
    %1056 = vmatprep.subr.mxu0 0.0
    %1057 = vmatpush1.msra.mxu0 %v891
    %1058 = vmatprep.subr.mxu0 0.0
    %1059 = vmatpush1.msra.mxu0 %v896
    %1060 = vmatprep.subr.mxu0 0.0
    %1061 = vmatpush1.msra.mxu0 %v901
    %1062 = vmatprep.subr.mxu0 0.0
    %1063 = vmatpush1.msra.mxu0 %v906
    %1064 = vmatprep.subr.mxu0 0.0
    %1065 = vmatpush1.msra.mxu0 %v911
    %1066 = vmatprep.subr.mxu0 0.0
    %1067 = vmatpush1.msra.mxu0 %v916
    %1068 = vmatprep.subr.mxu0 0.0
    %1069 = vmatpush1.msra.mxu0 %v921
    %1070 = vmatprep.subr.mxu0 0.0
    %1071 = vmatpush1.msra.mxu0 %v926
    %1072 = vmatprep.subr.mxu0 0.0
    %1073 = vmatpush1.msra.mxu0 %v931
    %1074 = vmatprep.subr.mxu0 0.0
    %1075 = vmatpush1.msra.mxu0 %v936
    %1076 = vmatprep.subr.mxu0 0.0
    %1077 = vmatpush1.msra.mxu0 %v941
    %1078 = vmatprep.subr.mxu0 0.0
    %1079 = vmatpush1.msra.mxu0 %v946
    %1080 = vmatprep.subr.mxu0 0.0
    %1081 = vmatpush1.msra.mxu0 %v951
    %1082 = vmatprep.mubr.f32.mxu0 %v377
    %1083 = vmatmul.mubr.f32.gmra.mrb[0].mxu0 %v376
    %v1084 = vpop.f32.mrb[0].mxu0
    %v1085 = vadd.f32 0.0, %v1084
    %v1086 = vpop.f32.mrb[0].mxu0
    %1087 = vmatprep.mubr.f32.mxu0 %v379
    %1088 = vmatmul.mubr.f32.gmra.mrb[0].mxu0 %v378
    %v1089 = vpop.f32.mrb[0].mxu0
    %v1090 = vadd.f32 0.0, %v1089
    %v1091 = vpop.f32.mrb[0].mxu0
    %1092 = vmatprep.mubr.f32.mxu0 %v381
    %1093 = vmatmul.mubr.f32.gmra.mrb[0].mxu0 %v380
    %v1094 = vpop.f32.mrb[0].mxu0
    %v1095 = vadd.f32 0.0, %v1094
    %v1096 = vpop.f32.mrb[0].mxu0
    %1097 = vmatprep.mubr.f32.mxu0 %v383
    %1098 = vmatmul.mubr.f32.gmra.mrb[0].mxu0 %v382
    %v1099 = vpop.f32.mrb[0].mxu0
    %v1100 = vadd.f32 0.0, %v1099
    %v1101 = vpop.f32.mrb[0].mxu0
    %1102 = vmatprep.mubr.f32.mxu0 %v385
    %1103 = vmatmul.mubr.f32.gmra.mrb[0].mxu0 %v384
    %v1104 = vpop.f32.mrb[0].mxu0
    %v1105 = vadd.f32 0.0, %v1104
    %v1106 = vpop.f32.mrb[0].mxu0
    %1107 = vmatprep.mubr.f32.mxu0 %v387
    %1108 = vmatmul.mubr.f32.gmra.mrb[0].mxu0 %v386
    %v1109 = vpop.f32.mrb[0].mxu0
    %v1110 = vadd.f32 0.0, %v1109
    %v1111 = vpop.f32.mrb[0].mxu0
    %1112 = vmatprep.mubr.f32.mxu0 %v389
    %1113 = vmatmul.mubr.f32.gmra.mrb[0].mxu0 %v388
    %v1114 = vpop.f32.mrb[0].mxu0
    %v1115 = vadd.f32 0.0, %v1114
    %v1116 = vpop.f32.mrb[0].mxu0
    %1117 = vmatprep.mubr.f32.mxu0 %v391
    %1118 = vmatmul.mubr.f32.gmra.mrb[0].mxu0 %v390
    %v1119 = vpop.f32.mrb[0].mxu0
    %v1120 = vadd.f32 0.0, %v1119
    %v1121 = vpop.f32.mrb[0].mxu0
    %1122 = vmatprep.mubr.f32.mxu0 %v393
    %1123 = vmatmul.mubr.f32.gmra.mrb[0].mxu0 %v392
    %v1124 = vpop.f32.mrb[0].mxu0
    %v1125 = vadd.f32 0.0, %v1124
    %v1126 = vpop.f32.mrb[0].mxu0
    %1127 = vmatprep.mubr.f32.mxu0 %v395
    %1128 = vmatmul.mubr.f32.gmra.mrb[0].mxu0 %v394
    %v1129 = vpop.f32.mrb[0].mxu0
    %v1130 = vadd.f32 0.0, %v1129
    %v1131 = vpop.f32.mrb[0].mxu0
    %1132 = vmatprep.mubr.f32.mxu0 %v397
    %1133 = vmatmul.mubr.f32.gmra.mrb[0].mxu0 %v396
    %v1134 = vpop.f32.mrb[0].mxu0
    %v1135 = vadd.f32 0.0, %v1134
    %v1136 = vpop.f32.mrb[0].mxu0
    %1137 = vmatprep.mubr.f32.mxu0 %v399
    %1138 = vmatmul.mubr.f32.gmra.mrb[0].mxu0 %v398
    %v1139 = vpop.f32.mrb[0].mxu0
    %v1140 = vadd.f32 0.0, %v1139
    %v1141 = vpop.f32.mrb[0].mxu0
    %1142 = vmatprep.mubr.f32.mxu0 %v401
    %1143 = vmatmul.mubr.f32.gmra.mrb[0].mxu0 %v400
    %v1144 = vpop.f32.mrb[0].mxu0
    %v1145 = vadd.f32 0.0, %v1144
    %v1146 = vpop.f32.mrb[0].mxu0
    %1147 = vmatprep.mubr.f32.mxu0 %v403
    %1148 = vmatmul.mubr.f32.gmra.mrb[0].mxu0 %v402
    %v1149 = vpop.f32.mrb[0].mxu0
    %v1150 = vadd.f32 0.0, %v1149
    %v1151 = vpop.f32.mrb[0].mxu0
    %1152 = vmatprep.mubr.f32.mxu0 %v405
    %1153 = vmatmul.mubr.f32.gmra.mrb[0].mxu0 %v404
    %v1154 = vpop.f32.mrb[0].mxu0
    %v1155 = vadd.f32 0.0, %v1154
    %v1156 = vpop.f32.mrb[0].mxu0
    %1157 = vmatprep.mubr.f32.mxu0 %v407
    %1158 = vmatmul.mubr.f32.gmra.mrb[0].mxu0 %v406
    %v1159 = vpop.f32.mrb[0].mxu0
    %v1160 = vadd.f32 0.0, %v1159
    %v1161 = vpop.f32.mrb[0].mxu0
    %1162 = vmatprep.mubr.f32.mxu0 %v409
    %1163 = vmatmul.mubr.f32.gmra.mrb[0].mxu0 %v408
    %v1164 = vpop.f32.mrb[0].mxu0
    %v1165 = vadd.f32 0.0, %v1164
    %v1166 = vpop.f32.mrb[0].mxu0
    %1167 = vmatprep.mubr.f32.mxu0 %v411
    %1168 = vmatmul.mubr.f32.gmra.mrb[0].mxu0 %v410
    %v1169 = vpop.f32.mrb[0].mxu0
    %v1170 = vadd.f32 0.0, %v1169
    %v1171 = vpop.f32.mrb[0].mxu0
    %1172 = vmatprep.mubr.f32.mxu0 %v413
    %1173 = vmatmul.mubr.f32.gmra.mrb[0].mxu0 %v412
    %v1174 = vpop.f32.mrb[0].mxu0
    %v1175 = vadd.f32 0.0, %v1174
    %v1176 = vpop.f32.mrb[0].mxu0
    %1177 = vmatprep.mubr.f32.mxu0 %v415
    %1178 = vmatmul.mubr.f32.gmra.mrb[0].mxu0 %v414
    %v1179 = vpop.f32.mrb[0].mxu0
    %v1180 = vadd.f32 0.0, %v1179
    %v1181 = vpop.f32.mrb[0].mxu0
    %1182 = vmatprep.mubr.f32.mxu0 %v417
    %1183 = vmatmul.mubr.f32.gmra.mrb[0].mxu0 %v416
    %v1184 = vpop.f32.mrb[0].mxu0
    %v1185 = vadd.f32 0.0, %v1184
    %v1186 = vpop.f32.mrb[0].mxu0
    %1187 = vmatprep.mubr.f32.mxu0 %v419
    %1188 = vmatmul.mubr.f32.gmra.mrb[0].mxu0 %v418
    %v1189 = vpop.f32.mrb[0].mxu0
    %v1190 = vadd.f32 0.0, %v1189
    %v1191 = vpop.f32.mrb[0].mxu0
    %1192 = vmatprep.mubr.f32.mxu0 %v421
    %1193 = vmatmul.mubr.f32.gmra.mrb[0].mxu0 %v420
    %v1194 = vpop.f32.mrb[0].mxu0
    %v1195 = vadd.f32 0.0, %v1194
    %v1196 = vpop.f32.mrb[0].mxu0
    %1197 = vmatprep.mubr.f32.mxu0 %v423
    %1198 = vmatmul.mubr.f32.gmra.mrb[0].mxu0 %v422
    %v1199 = vpop.f32.mrb[0].mxu0
    %v1200 = vadd.f32 0.0, %v1199
    %v1201 = vpop.f32.mrb[0].mxu0
    %1202 = vmatprep.mubr.f32.mxu0 %v425
    %1203 = vmatmul.mubr.f32.gmra.mrb[0].mxu0 %v424
    %v1204 = vpop.f32.mrb[0].mxu0
    %v1205 = vadd.f32 0.0, %v1204
    %v1206 = vpop.f32.mrb[0].mxu0
    %1207 = vmatprep.mubr.f32.mxu0 %v427
    %1208 = vmatmul.mubr.f32.gmra.mrb[0].mxu0 %v426
    %v1209 = vpop.f32.mrb[0].mxu0
    %v1210 = vadd.f32 0.0, %v1209
    %v1211 = vpop.f32.mrb[0].mxu0
    %1212 = vmatprep.mubr.f32.mxu0 %v429
    %1213 = vmatmul.mubr.f32.gmra.mrb[0].mxu0 %v428
    %v1214 = vpop.f32.mrb[0].mxu0
    %v1215 = vadd.f32 0.0, %v1214
    %v1216 = vpop.f32.mrb[0].mxu0
    %1217 = vmatprep.mubr.f32.mxu0 %v431
    %1218 = vmatmul.mubr.f32.gmra.mrb[0].mxu0 %v430
    %v1219 = vpop.f32.mrb[0].mxu0
    %v1220 = vadd.f32 0.0, %v1219
    %v1221 = vpop.f32.mrb[0].mxu0
    %1222 = vmatprep.mubr.f32.mxu0 %v433
    %1223 = vmatmul.mubr.f32.gmra.mrb[0].mxu0 %v432
    %v1224 = vpop.f32.mrb[0].mxu0
    %v1225 = vadd.f32 0.0, %v1224
    %v1226 = vpop.f32.mrb[0].mxu0
    %1227 = vmatprep.mubr.f32.mxu0 %v435
    %1228 = vmatmul.mubr.f32.gmra.mrb[0].mxu0 %v434
    %v1229 = vpop.f32.mrb[0].mxu0
    %v1230 = vadd.f32 0.0, %v1229
    %v1231 = vpop.f32.mrb[0].mxu0
    %1232 = vmatprep.mubr.f32.mxu0 %v437
    %1233 = vmatmul.mubr.f32.gmra.mrb[0].mxu0 %v436
    %v1234 = vpop.f32.mrb[0].mxu0
    %v1235 = vadd.f32 0.0, %v1234
    %v1236 = vpop.f32.mrb[0].mxu0
    %1237 = vmatprep.mubr.f32.mxu0 %v439
    %1238 = vmatmul.mubr.f32.gmra.mrb[0].mxu0 %v438
    %v1239 = vpop.f32.mrb[0].mxu0
    %v1240 = vadd.f32 0.0, %v1239
    %v1241 = vpop.f32.mrb[0].mxu0
    %1242 = vdwg.mxu0
    %v1243 = vmul.f32 %v1085, 0.05625
    %v1244 = vmul.f32 %v1090, 0.05625
    %v1245 = vmul.f32 %v1095, 0.05625
    %v1246 = vmul.f32 %v1100, 0.05625
    %v1247 = vmul.f32 %v1105, 0.05625
    %v1248 = vmul.f32 %v1110, 0.05625
    %v1249 = vmul.f32 %v1115, 0.05625
    %v1250 = vmul.f32 %v1120, 0.05625
    %v1251 = vmul.f32 %v1125, 0.05625
    %v1252 = vmul.f32 %v1130, 0.05625
    %v1253 = vmul.f32 %v1135, 0.05625
    %v1254 = vmul.f32 %v1140, 0.05625
    %v1255 = vmul.f32 %v1145, 0.05625
    %v1256 = vmul.f32 %v1150, 0.05625
    %v1257 = vmul.f32 %v1155, 0.05625
    %v1258 = vmul.f32 %v1160, 0.05625
    %v1259 = vmul.f32 %v1165, 0.05625
    %v1260 = vmul.f32 %v1170, 0.05625
    %v1261 = vmul.f32 %v1175, 0.05625
    %v1262 = vmul.f32 %v1180, 0.05625
    %v1263 = vmul.f32 %v1185, 0.05625
    %v1264 = vmul.f32 %v1190, 0.05625
    %v1265 = vmul.f32 %v1195, 0.05625
    %v1266 = vmul.f32 %v1200, 0.05625
    %v1267 = vmul.f32 %v1205, 0.05625
    %v1268 = vmul.f32 %v1210, 0.05625
    %v1269 = vmul.f32 %v1215, 0.05625
    %v1270 = vmul.f32 %v1220, 0.05625
    %v1271 = vmul.f32 %v1225, 0.05625
    %v1272 = vmul.f32 %v1230, 0.05625
    %v1273 = vmul.f32 %v1235, 0.05625
    %v1274 = vmul.f32 %v1240, 0.05625
    %v1275 = vadd.f32 %v986, %v1243
    %v1276 = vadd.f32 %v987, %v1244
    %v1277 = vadd.f32 %v988, %v1245
    %v1278 = vadd.f32 %v989, %v1246
    %v1279 = vadd.f32 %v990, %v1247
    %v1280 = vadd.f32 %v991, %v1248
    %v1281 = vadd.f32 %v992, %v1249
    %v1282 = vadd.f32 %v993, %v1250
    %v1283 = vadd.f32 %v994, %v1251
    %v1284 = vadd.f32 %v995, %v1252
    %v1285 = vadd.f32 %v996, %v1253
    %v1286 = vadd.f32 %v997, %v1254
    %v1287 = vadd.f32 %v998, %v1255
    %v1288 = vadd.f32 %v999, %v1256
    %v1289 = vadd.f32 %v1000, %v1257
    %v1290 = vadd.f32 %v1001, %v1258
    %v1291 = vadd.f32 %v1002, %v1259
    %v1292 = vadd.f32 %v1003, %v1260
    %v1293 = vadd.f32 %v1004, %v1261
    %v1294 = vadd.f32 %v1005, %v1262
    %v1295 = vadd.f32 %v1006, %v1263
    %v1296 = vadd.f32 %v1007, %v1264
    %v1297 = vadd.f32 %v1008, %v1265
    %v1298 = vadd.f32 %v1009, %v1266
    %v1299 = vadd.f32 %v1010, %v1267
    %v1300 = vadd.f32 %v1011, %v1268
    %v1301 = vadd.f32 %v1012, %v1269
    %v1302 = vadd.f32 %v1013, %v1270
    %v1303 = vadd.f32 %v1014, %v1271
    %v1304 = vadd.f32 %v1015, %v1272
    %v1305 = vadd.f32 %v1016, %v1273
    %v1306 = vadd.f32 %v1017, %v1274
    %1307 = vmatprep.subr.mxu0 0.0
    %1308 = vmatpush1.msra.mxu0 %v1085
    %1309 = vmatprep.subr.mxu0 0.0
    %1310 = vmatpush1.msra.mxu0 %v1090
    %1311 = vmatprep.subr.mxu0 0.0
    %1312 = vmatpush1.msra.mxu0 %v1095
    %1313 = vmatprep.subr.mxu0 0.0
    %1314 = vmatpush1.msra.mxu0 %v1100
    %1315 = vmatprep.subr.mxu0 0.0
    %1316 = vmatpush1.msra.mxu0 %v1105
    %1317 = vmatprep.subr.mxu0 0.0
    %1318 = vmatpush1.msra.mxu0 %v1110
    %1319 = vmatprep.subr.mxu0 0.0
    %1320 = vmatpush1.msra.mxu0 %v1115
    %1321 = vmatprep.subr.mxu0 0.0
    %1322 = vmatpush1.msra.mxu0 %v1120
    %1323 = vmatprep.subr.mxu0 0.0
    %1324 = vmatpush1.msra.mxu0 %v1125
    %1325 = vmatprep.subr.mxu0 0.0
    %1326 = vmatpush1.msra.mxu0 %v1130
    %1327 = vmatprep.subr.mxu0 0.0
    %1328 = vmatpush1.msra.mxu0 %v1135
    %1329 = vmatprep.subr.mxu0 0.0
    %1330 = vmatpush1.msra.mxu0 %v1140
    %1331 = vmatprep.subr.mxu0 0.0
    %1332 = vmatpush1.msra.mxu0 %v1145
    %1333 = vmatprep.subr.mxu0 0.0
    %1334 = vmatpush1.msra.mxu0 %v1150
    %1335 = vmatprep.subr.mxu0 0.0
    %1336 = vmatpush1.msra.mxu0 %v1155
    %1337 = vmatprep.subr.mxu0 0.0
    %1338 = vmatpush1.msra.mxu0 %v1160
    %1339 = vmatprep.subr.mxu0 0.0
    %1340 = vmatpush1.msra.mxu0 %v1165
    %1341 = vmatprep.subr.mxu0 0.0
    %1342 = vmatpush1.msra.mxu0 %v1170
    %1343 = vmatprep.subr.mxu0 0.0
    %1344 = vmatpush1.msra.mxu0 %v1175
    %1345 = vmatprep.subr.mxu0 0.0
    %1346 = vmatpush1.msra.mxu0 %v1180
    %1347 = vmatprep.subr.mxu0 0.0
    %1348 = vmatpush1.msra.mxu0 %v1185
    %1349 = vmatprep.subr.mxu0 0.0
    %1350 = vmatpush1.msra.mxu0 %v1190
    %1351 = vmatprep.subr.mxu0 0.0
    %1352 = vmatpush1.msra.mxu0 %v1195
    %1353 = vmatprep.subr.mxu0 0.0
    %1354 = vmatpush1.msra.mxu0 %v1200
    %1355 = vmatprep.subr.mxu0 0.0
    %1356 = vmatpush1.msra.mxu0 %v1205
    %1357 = vmatprep.subr.mxu0 0.0
    %1358 = vmatpush1.msra.mxu0 %v1210
    %1359 = vmatprep.subr.mxu0 0.0
    %1360 = vmatpush1.msra.mxu0 %v1215
    %1361 = vmatprep.subr.mxu0 0.0
    %1362 = vmatpush1.msra.mxu0 %v1220
    %1363 = vmatprep.subr.mxu0 0.0
    %1364 = vmatpush1.msra.mxu0 %v1225
    %1365 = vmatprep.subr.mxu0 0.0
    %1366 = vmatpush1.msra.mxu0 %v1230
    %1367 = vmatprep.subr.mxu0 0.0
    %1368 = vmatpush1.msra.mxu0 %v1235
    %1369 = vmatprep.subr.mxu0 0.0
    %1370 = vmatpush1.msra.mxu0 %v1240
    %1371 = vmatprep.mubr.f32.mxu0 %v377
    %1372 = vmatmul.mubr.f32.gmra.mrb[0].mxu0 %v376
    %v1373 = vpop.f32.mrb[0].mxu0
    %v1374 = vadd.f32 0.0, %v1373
    %v1375 = vpop.f32.mrb[0].mxu0
    %1376 = vmatprep.mubr.f32.mxu0 %v379
    %1377 = vmatmul.mubr.f32.gmra.mrb[0].mxu0 %v378
    %v1378 = vpop.f32.mrb[0].mxu0
    %v1379 = vadd.f32 0.0, %v1378
    %v1380 = vpop.f32.mrb[0].mxu0
    %1381 = vmatprep.mubr.f32.mxu0 %v381
    %1382 = vmatmul.mubr.f32.gmra.mrb[0].mxu0 %v380
    %v1383 = vpop.f32.mrb[0].mxu0
    %v1384 = vadd.f32 0.0, %v1383
    %v1385 = vpop.f32.mrb[0].mxu0
    %1386 = vmatprep.mubr.f32.mxu0 %v383
    %1387 = vmatmul.mubr.f32.gmra.mrb[0].mxu0 %v382
    %v1388 = vpop.f32.mrb[0].mxu0
    %v1389 = vadd.f32 0.0, %v1388
    %v1390 = vpop.f32.mrb[0].mxu0
    %1391 = vmatprep.mubr.f32.mxu0 %v385
    %1392 = vmatmul.mubr.f32.gmra.mrb[0].mxu0 %v384
    %v1393 = vpop.f32.mrb[0].mxu0
    %v1394 = vadd.f32 0.0, %v1393
    %v1395 = vpop.f32.mrb[0].mxu0
    %1396 = vmatprep.mubr.f32.mxu0 %v387
    %1397 = vmatmul.mubr.f32.gmra.mrb[0].mxu0 %v386
    %v1398 = vpop.f32.mrb[0].mxu0
    %v1399 = vadd.f32 0.0, %v1398
    %v1400 = vpop.f32.mrb[0].mxu0
    %1401 = vmatprep.mubr.f32.mxu0 %v389
    %1402 = vmatmul.mubr.f32.gmra.mrb[0].mxu0 %v388
    %v1403 = vpop.f32.mrb[0].mxu0
    %v1404 = vadd.f32 0.0, %v1403
    %v1405 = vpop.f32.mrb[0].mxu0
    %1406 = vmatprep.mubr.f32.mxu0 %v391
    %1407 = vmatmul.mubr.f32.gmra.mrb[0].mxu0 %v390
    %v1408 = vpop.f32.mrb[0].mxu0
    %v1409 = vadd.f32 0.0, %v1408
    %v1410 = vpop.f32.mrb[0].mxu0
    %1411 = vmatprep.mubr.f32.mxu0 %v393
    %1412 = vmatmul.mubr.f32.gmra.mrb[0].mxu0 %v392
    %v1413 = vpop.f32.mrb[0].mxu0
    %v1414 = vadd.f32 0.0, %v1413
    %v1415 = vpop.f32.mrb[0].mxu0
    %1416 = vmatprep.mubr.f32.mxu0 %v395
    %1417 = vmatmul.mubr.f32.gmra.mrb[0].mxu0 %v394
    %v1418 = vpop.f32.mrb[0].mxu0
    %v1419 = vadd.f32 0.0, %v1418
    %v1420 = vpop.f32.mrb[0].mxu0
    %1421 = vmatprep.mubr.f32.mxu0 %v397
    %1422 = vmatmul.mubr.f32.gmra.mrb[0].mxu0 %v396
    %v1423 = vpop.f32.mrb[0].mxu0
    %v1424 = vadd.f32 0.0, %v1423
    %v1425 = vpop.f32.mrb[0].mxu0
    %1426 = vmatprep.mubr.f32.mxu0 %v399
    %1427 = vmatmul.mubr.f32.gmra.mrb[0].mxu0 %v398
    %v1428 = vpop.f32.mrb[0].mxu0
    %v1429 = vadd.f32 0.0, %v1428
    %v1430 = vpop.f32.mrb[0].mxu0
    %1431 = vmatprep.mubr.f32.mxu0 %v401
    %1432 = vmatmul.mubr.f32.gmra.mrb[0].mxu0 %v400
    %v1433 = vpop.f32.mrb[0].mxu0
    %v1434 = vadd.f32 0.0, %v1433
    %v1435 = vpop.f32.mrb[0].mxu0
    %1436 = vmatprep.mubr.f32.mxu0 %v403
    %1437 = vmatmul.mubr.f32.gmra.mrb[0].mxu0 %v402
    %v1438 = vpop.f32.mrb[0].mxu0
    %v1439 = vadd.f32 0.0, %v1438
    %v1440 = vpop.f32.mrb[0].mxu0
    %1441 = vmatprep.mubr.f32.mxu0 %v405
    %1442 = vmatmul.mubr.f32.gmra.mrb[0].mxu0 %v404
    %v1443 = vpop.f32.mrb[0].mxu0
    %v1444 = vadd.f32 0.0, %v1443
    %v1445 = vpop.f32.mrb[0].mxu0
    %1446 = vmatprep.mubr.f32.mxu0 %v407
    %1447 = vmatmul.mubr.f32.gmra.mrb[0].mxu0 %v406
    %v1448 = vpop.f32.mrb[0].mxu0
    %v1449 = vadd.f32 0.0, %v1448
    %v1450 = vpop.f32.mrb[0].mxu0
    %1451 = vmatprep.mubr.f32.mxu0 %v409
    %1452 = vmatmul.mubr.f32.gmra.mrb[0].mxu0 %v408
    %v1453 = vpop.f32.mrb[0].mxu0
    %v1454 = vadd.f32 0.0, %v1453
    %v1455 = vpop.f32.mrb[0].mxu0
    %1456 = vmatprep.mubr.f32.mxu0 %v411
    %1457 = vmatmul.mubr.f32.gmra.mrb[0].mxu0 %v410
    %v1458 = vpop.f32.mrb[0].mxu0
    %v1459 = vadd.f32 0.0, %v1458
    %v1460 = vpop.f32.mrb[0].mxu0
    %1461 = vmatprep.mubr.f32.mxu0 %v413
    %1462 = vmatmul.mubr.f32.gmra.mrb[0].mxu0 %v412
    %v1463 = vpop.f32.mrb[0].mxu0
    %v1464 = vadd.f32 0.0, %v1463
    %v1465 = vpop.f32.mrb[0].mxu0
    %1466 = vmatprep.mubr.f32.mxu0 %v415
    %1467 = vmatmul.mubr.f32.gmra.mrb[0].mxu0 %v414
    %v1468 = vpop.f32.mrb[0].mxu0
    %v1469 = vadd.f32 0.0, %v1468
    %v1470 = vpop.f32.mrb[0].mxu0
    %1471 = vmatprep.mubr.f32.mxu0 %v417
    %1472 = vmatmul.mubr.f32.gmra.mrb[0].mxu0 %v416
    %v1473 = vpop.f32.mrb[0].mxu0
    %v1474 = vadd.f32 0.0, %v1473
    %v1475 = vpop.f32.mrb[0].mxu0
    %1476 = vmatprep.mubr.f32.mxu0 %v419
    %1477 = vmatmul.mubr.f32.gmra.mrb[0].mxu0 %v418
    %v1478 = vpop.f32.mrb[0].mxu0
    %v1479 = vadd.f32 0.0, %v1478
    %v1480 = vpop.f32.mrb[0].mxu0
    %1481 = vmatprep.mubr.f32.mxu0 %v421
    %1482 = vmatmul.mubr.f32.gmra.mrb[0].mxu0 %v420
    %v1483 = vpop.f32.mrb[0].mxu0
    %v1484 = vadd.f32 0.0, %v1483
    %v1485 = vpop.f32.mrb[0].mxu0
    %1486 = vmatprep.mubr.f32.mxu0 %v423
    %1487 = vmatmul.mubr.f32.gmra.mrb[0].mxu0 %v422
    %v1488 = vpop.f32.mrb[0].mxu0
    %v1489 = vadd.f32 0.0, %v1488
    %v1490 = vpop.f32.mrb[0].mxu0
    %1491 = vmatprep.mubr.f32.mxu0 %v425
    %1492 = vmatmul.mubr.f32.gmra.mrb[0].mxu0 %v424
    %v1493 = vpop.f32.mrb[0].mxu0
    %v1494 = vadd.f32 0.0, %v1493
    %v1495 = vpop.f32.mrb[0].mxu0
    %1496 = vmatprep.mubr.f32.mxu0 %v427
    %1497 = vmatmul.mubr.f32.gmra.mrb[0].mxu0 %v426
    %v1498 = vpop.f32.mrb[0].mxu0
    %v1499 = vadd.f32 0.0, %v1498
    %v1500 = vpop.f32.mrb[0].mxu0
    %1501 = vmatprep.mubr.f32.mxu0 %v429
    %1502 = vmatmul.mubr.f32.gmra.mrb[0].mxu0 %v428
    %v1503 = vpop.f32.mrb[0].mxu0
    %v1504 = vadd.f32 0.0, %v1503
    %v1505 = vpop.f32.mrb[0].mxu0
    %1506 = vmatprep.mubr.f32.mxu0 %v431
    %1507 = vmatmul.mubr.f32.gmra.mrb[0].mxu0 %v430
    %v1508 = vpop.f32.mrb[0].mxu0
    %v1509 = vadd.f32 0.0, %v1508
    %v1510 = vpop.f32.mrb[0].mxu0
    %1511 = vmatprep.mubr.f32.mxu0 %v433
    %1512 = vmatmul.mubr.f32.gmra.mrb[0].mxu0 %v432
    %v1513 = vpop.f32.mrb[0].mxu0
    %v1514 = vadd.f32 0.0, %v1513
    %v1515 = vpop.f32.mrb[0].mxu0
    %1516 = vmatprep.mubr.f32.mxu0 %v435
    %1517 = vmatmul.mubr.f32.gmra.mrb[0].mxu0 %v434
    %v1518 = vpop.f32.mrb[0].mxu0
    %v1519 = vadd.f32 0.0, %v1518
    %v1520 = vpop.f32.mrb[0].mxu0
    %1521 = vmatprep.mubr.f32.mxu0 %v437
    %1522 = vmatmul.mubr.f32.gmra.mrb[0].mxu0 %v436
    %v1523 = vpop.f32.mrb[0].mxu0
    %v1524 = vadd.f32 0.0, %v1523
    %v1525 = vpop.f32.mrb[0].mxu0
    %1526 = vmatprep.mubr.f32.mxu0 %v439
    %1527 = vmatmul.mubr.f32.gmra.mrb[0].mxu0 %v438
    %v1528 = vpop.f32.mrb[0].mxu0
    %v1529 = vadd.f32 0.0, %v1528
    %v1530 = vpop.f32.mrb[0].mxu0
    %1531 = vdwg.mxu0
    %v1532 = vmul.f32 %v1374, 0.225
    %v1533 = vmul.f32 %v1379, 0.225
    %v1534 = vmul.f32 %v1384, 0.225
    %v1535 = vmul.f32 %v1389, 0.225
    %v1536 = vmul.f32 %v1394, 0.225
    %v1537 = vmul.f32 %v1399, 0.225
    %v1538 = vmul.f32 %v1404, 0.225
    %v1539 = vmul.f32 %v1409, 0.225
    %v1540 = vmul.f32 %v1414, 0.225
    %v1541 = vmul.f32 %v1419, 0.225
    %v1542 = vmul.f32 %v1424, 0.225
    %v1543 = vmul.f32 %v1429, 0.225
    %v1544 = vmul.f32 %v1434, 0.225
    %v1545 = vmul.f32 %v1439, 0.225
    %v1546 = vmul.f32 %v1444, 0.225
    %v1547 = vmul.f32 %v1449, 0.225
    %v1548 = vmul.f32 %v1454, 0.225
    %v1549 = vmul.f32 %v1459, 0.225
    %v1550 = vmul.f32 %v1464, 0.225
    %v1551 = vmul.f32 %v1469, 0.225
    %v1552 = vmul.f32 %v1474, 0.225
    %v1553 = vmul.f32 %v1479, 0.225
    %v1554 = vmul.f32 %v1484, 0.225
    %v1555 = vmul.f32 %v1489, 0.225
    %v1556 = vmul.f32 %v1494, 0.225
    %v1557 = vmul.f32 %v1499, 0.225
    %v1558 = vmul.f32 %v1504, 0.225
    %v1559 = vmul.f32 %v1509, 0.225
    %v1560 = vmul.f32 %v1514, 0.225
    %v1561 = vmul.f32 %v1519, 0.225
    %v1562 = vmul.f32 %v1524, 0.225
    %v1563 = vmul.f32 %v1529, 0.225
    %v1564 = vadd.f32 %v1275, %v1532
    %v1565 = vadd.f32 %v1276, %v1533
    %v1566 = vadd.f32 %v1277, %v1534
    %v1567 = vadd.f32 %v1278, %v1535
    %v1568 = vadd.f32 %v1279, %v1536
    %v1569 = vadd.f32 %v1280, %v1537
    %v1570 = vadd.f32 %v1281, %v1538
    %v1571 = vadd.f32 %v1282, %v1539
    %v1572 = vadd.f32 %v1283, %v1540
    %v1573 = vadd.f32 %v1284, %v1541
    %v1574 = vadd.f32 %v1285, %v1542
    %v1575 = vadd.f32 %v1286, %v1543
    %v1576 = vadd.f32 %v1287, %v1544
    %v1577 = vadd.f32 %v1288, %v1545
    %v1578 = vadd.f32 %v1289, %v1546
    %v1579 = vadd.f32 %v1290, %v1547
    %v1580 = vadd.f32 %v1291, %v1548
    %v1581 = vadd.f32 %v1292, %v1549
    %v1582 = vadd.f32 %v1293, %v1550
    %v1583 = vadd.f32 %v1294, %v1551
    %v1584 = vadd.f32 %v1295, %v1552
    %v1585 = vadd.f32 %v1296, %v1553
    %v1586 = vadd.f32 %v1297, %v1554
    %v1587 = vadd.f32 %v1298, %v1555
    %v1588 = vadd.f32 %v1299, %v1556
    %v1589 = vadd.f32 %v1300, %v1557
    %v1590 = vadd.f32 %v1301, %v1558
    %v1591 = vadd.f32 %v1302, %v1559
    %v1592 = vadd.f32 %v1303, %v1560
    %v1593 = vadd.f32 %v1304, %v1561
    %v1594 = vadd.f32 %v1305, %v1562
    %v1595 = vadd.f32 %v1306, %v1563
    %v1596 = vld [vmem:[#allocation8] sm:$0x1]
    %v1598 = vlaneseq
    %v1599 = vshrl.u32 %v1598, 7
    %v1600 = vsub.s32 0, %v1599
    %v1601 = vrot.slane %v1596, %v1600
    %v1603 = vadd.f32 %v1564, %v1601
    %v1604 = vadd.f32 %v1565, %v1601
    %v1605 = vadd.f32 %v1566, %v1601
    %v1606 = vadd.f32 %v1567, %v1601
    %v1607 = vadd.f32 %v1568, %v1601
    %v1608 = vadd.f32 %v1569, %v1601
    %v1609 = vadd.f32 %v1570, %v1601
    %v1610 = vadd.f32 %v1571, %v1601
    %v1611 = vadd.f32 %v1572, %v1601
    %v1612 = vadd.f32 %v1573, %v1601
    %v1613 = vadd.f32 %v1574, %v1601
    %v1614 = vadd.f32 %v1575, %v1601
    %v1615 = vadd.f32 %v1576, %v1601
    %v1616 = vadd.f32 %v1577, %v1601
    %v1617 = vadd.f32 %v1578, %v1601
    %v1618 = vadd.f32 %v1579, %v1601
    %v1619 = vadd.f32 %v1580, %v1601
    %v1620 = vadd.f32 %v1581, %v1601
    %v1621 = vadd.f32 %v1582, %v1601
    %v1622 = vadd.f32 %v1583, %v1601
    %v1623 = vadd.f32 %v1584, %v1601
    %v1624 = vadd.f32 %v1585, %v1601
    %v1625 = vadd.f32 %v1586, %v1601
    %v1626 = vadd.f32 %v1587, %v1601
    %v1627 = vadd.f32 %v1588, %v1601
    %v1628 = vadd.f32 %v1589, %v1601
    %v1629 = vadd.f32 %v1590, %v1601
    %v1630 = vadd.f32 %v1591, %v1601
    %v1631 = vadd.f32 %v1592, %v1601
    %v1632 = vadd.f32 %v1593, %v1601
    %v1633 = vadd.f32 %v1594, %v1601
    %v1634 = vadd.f32 %v1595, %v1601
    %1635 = vst [vmem:[#allocation10] sm:$0xff] %v1603
    %1636 = vst [vmem:[#allocation10 + $0x8] sm:$0xff] %v1604
    %1637 = vst [vmem:[#allocation10 + $0x10] sm:$0xff] %v1605
    %1638 = vst [vmem:[#allocation10 + $0x18] sm:$0xff] %v1606
    %1639 = vst [vmem:[#allocation10 + $0x20] sm:$0xff] %v1607
    %1640 = vst [vmem:[#allocation10 + $0x28] sm:$0xff] %v1608
    %1641 = vst [vmem:[#allocation10 + $0x30] sm:$0xff] %v1609
    %1642 = vst [vmem:[#allocation10 + $0x38] sm:$0xff] %v1610
    %1643 = vst [vmem:[#allocation10 + $0x40] sm:$0xff] %v1611
    %1644 = vst [vmem:[#allocation10 + $0x48] sm:$0xff] %v1612
    %1645 = vst [vmem:[#allocation10 + $0x50] sm:$0xff] %v1613
    %1646 = vst [vmem:[#allocation10 + $0x58] sm:$0xff] %v1614
    %1647 = vst [vmem:[#allocation10 + $0x60] sm:$0xff] %v1615
    %1648 = vst [vmem:[#allocation10 + $0x68] sm:$0xff] %v1616
    %1649 = vst [vmem:[#allocation10 + $0x70] sm:$0xff] %v1617
    %1650 = vst [vmem:[#allocation10 + $0x78] sm:$0xff] %v1618
    %1651 = vst [vmem:[#allocation10 + $0x80] sm:$0xff] %v1619
    %1652 = vst [vmem:[#allocation10 + $0x88] sm:$0xff] %v1620
    %1653 = vst [vmem:[#allocation10 + $0x90] sm:$0xff] %v1621
    %1654 = vst [vmem:[#allocation10 + $0x98] sm:$0xff] %v1622
    %1655 = vst [vmem:[#allocation10 + $0xa0] sm:$0xff] %v1623
    %1656 = vst [vmem:[#allocation10 + $0xa8] sm:$0xff] %v1624
    %1657 = vst [vmem:[#allocation10 + $0xb0] sm:$0xff] %v1625
    %1658 = vst [vmem:[#allocation10 + $0xb8] sm:$0xff] %v1626
    %1659 = vst [vmem:[#allocation10 + $0xc0] sm:$0xff] %v1627
    %1660 = vst [vmem:[#allocation10 + $0xc8] sm:$0xff] %v1628
    %1661 = vst [vmem:[#allocation10 + $0xd0] sm:$0xff] %v1629
    %1662 = vst [vmem:[#allocation10 + $0xd8] sm:$0xff] %v1630
    %1663 = vst [vmem:[#allocation10 + $0xe0] sm:$0xff] %v1631
    %1664 = vst [vmem:[#allocation10 + $0xe8] sm:$0xff] %v1632
    %1665 = vst [vmem:[#allocation10 + $0xf0] sm:$0xff] %v1633
    %1666 = vst [vmem:[#allocation10 + $0xf8] sm:$0xff] %v1634
    // Predicated region
    $region34: #{tpu_custom_call.1} parent=1 // pred_check
      _
    $region35: #{tpu_custom_call.1} parent=1 // pred_check_branch
      %1668 = sbr.rel (0) target = $region37
    $region36: #{tpu_custom_call.1} parent=1 // pred_region
      %s1670 = ssub.s32 4096, 4096
      %1671 = vsyncadd [#allocation4], %s1670
      %s1672 = sshll.u32 [#allocation10], 4
      %s1673 = int_to_ptr.vmem [resolvable:$true] %s1672
      %1678 = dma.vmem_to_hbm [thread:$0]  %s1673, 4096, %s4, [#allocation4], 128, 128, 8
    $region37: #{tpu_custom_call.1} parent=1 // pred_fallthru
      _
    // Predicated region
    $region38: #{tpu_custom_call.1} parent=1 // pred_check
      _
    $region39: #{tpu_custom_call.1} parent=1 // pred_check_branch
      %1680 = sbr.rel (0) target = $region41
    $region40: #{tpu_custom_call.1} parent=1 // pred_region
      %1681 = dma.done [#allocation4], 4096
    $region41: #{tpu_custom_call.1} parent=1 // pred_fallthru
      _
    %1682 = vsyncpa [#allocation3], 1
    %1683 = vsyncpa [#allocation6], 1
    %1684 = vsyncpa [#allocation9], 1
    %1685 = vsyncpa [#allocation4], 1

</llo_original>
